<compile_context>
chip_gen: v6e
topology: v6e:2x2x1
jax: 0.10.0
libtpu: 0.0.40
codegen_flags: <defaults>
</compile_context>

<pallas_src>
import functools

import jax
import jax.numpy as jnp
from jax.experimental import pallas as pl
from jax.experimental.pallas import tpu as pltpu

EPS = 1e-5
_VMEM_LIMIT = 32 * 1024 * 1024  # explicit scoped-VMEM budget (safe on v5e/v6e/v7x)


# ---------------------------------------------------------------------------
# small static helpers (fold factor / tile picking)
# ---------------------------------------------------------------------------
def _pick_fo(cout, ow):
    """Output fold factor: fo*Cout == 128 lanes when possible."""
    if cout < 128 and 128 % cout == 0:
        fo = 128 // cout
    else:
        fo = 1
    while fo > 1 and ow % fo != 0:
        fo //= 2
    return fo


def _pick_tile(rows, target):
    """Largest divisor of `rows` <= target that is a multiple of 16 (else full)."""
    if rows <= target:
        return rows
    for d in range(min(target, rows), 0, -1):
        if rows % d == 0 and d % 16 == 0:
            return d
    return rows


# ---------------------------------------------------------------------------
# Pallas kernels
# ---------------------------------------------------------------------------
def _conv_stats_kernel(x_ref, w_ref, out_ref, sum_ref, sq_ref):
    # One lane-dense conv tile: single MXU matmul (bf16 operands, f32 acc).
    acc = jnp.dot(x_ref[...], w_ref[...], preferred_element_type=jnp.float32)
    out_ref[...] = acc                                           # f32 intermediate
    # Per-tile, per-lane partial sums for the global BatchNorm statistics.
    sum_ref[...] = jnp.sum(acc, axis=0, keepdims=True)[None]
    sq_ref[...] = jnp.sum(acc * acc, axis=0, keepdims=True)[None]


def _bn_relu_kernel(x_ref, scale_ref, shift_ref, o_ref):
    # Fused BN apply (single multiply) + ReLU, lane-dense in/out.
    y = x_ref[...] * scale_ref[...] + shift_ref[...]
    o_ref[...] = jnp.maximum(y, 0.0).astype(o_ref.dtype)


# ---------------------------------------------------------------------------
# pallas_call wrappers
# ---------------------------------------------------------------------------
def _conv_stats_pallas(slab, w_full, tile_rows):
    MR, KT = slab.shape
    NL = w_full.shape[1]
    n_tiles = MR // tile_rows
    flops = 2 * MR * NL * KT
    bytes_accessed = (MR * KT * 2 + KT * NL * 2
                      + MR * NL * 4 + 2 * n_tiles * NL * 4)
    return pl.pallas_call(
        _conv_stats_kernel,
        out_shape=(
            jax.ShapeDtypeStruct((MR, NL), jnp.float32),          # conv intermediate
            jax.ShapeDtypeStruct((n_tiles, 1, NL), jnp.float32),  # per-tile sums
            jax.ShapeDtypeStruct((n_tiles, 1, NL), jnp.float32),  # per-tile sumsq
        ),
        grid=(n_tiles,),
        in_specs=[
            pl.BlockSpec((tile_rows, KT), lambda i: (i, 0)),
            pl.BlockSpec((KT, NL), lambda i: (0, 0)),
        ],
        out_specs=(
            pl.BlockSpec((tile_rows, NL), lambda i: (i, 0)),
            pl.BlockSpec((1, 1, NL), lambda i: (i, 0, 0)),
            pl.BlockSpec((1, 1, NL), lambda i: (i, 0, 0)),
        ),
        compiler_params=pltpu.CompilerParams(
            dimension_semantics=("parallel",),
            vmem_limit_bytes=_VMEM_LIMIT),
        cost_estimate=pl.CostEstimate(
            flops=flops, transcendentals=0, bytes_accessed=bytes_accessed),
    )(slab, w_full)


def _bn_relu_pallas(conv_f32, scale_row, shift_row, tile_rows):
    MR, NL = conv_f32.shape
    n_tiles = MR // tile_rows
    return pl.pallas_call(
        _bn_relu_kernel,
        out_shape=jax.ShapeDtypeStruct((MR, NL), jnp.bfloat16),
        grid=(n_tiles,),
        in_specs=[
            pl.BlockSpec((tile_rows, NL), lambda i: (i, 0)),
            pl.BlockSpec((1, NL), lambda i: (0, 0)),
            pl.BlockSpec((1, NL), lambda i: (0, 0)),
        ],
        out_specs=pl.BlockSpec((tile_rows, NL), lambda i: (i, 0)),
        compiler_params=pltpu.CompilerParams(
            dimension_semantics=("parallel",),
            vmem_limit_bytes=_VMEM_LIMIT),
        cost_estimate=pl.CostEstimate(
            flops=3 * MR * NL, transcendentals=0,
            bytes_accessed=MR * NL * 4 + MR * NL * 2 + 2 * NL * 4),
    )(conv_f32, scale_row, shift_row)


# ---------------------------------------------------------------------------
# wrapper-side data plumbing (plain XLA ops: pad / slice / reshape / concat)
# ---------------------------------------------------------------------------
def _build_folded_slab(x, stride, OH, OW, fi, fo, P):
    """One slab row per (b, oh, fold): 3 kh-windows of fi+(3-stride) padded cols."""
    B, H, W, Cin = x.shape
    sp_w = 3 - stride            # spill columns per fold window (1 or 2)
    # pad: 1 row top/bottom, 1 col left, `fi` cols right (extra zeros only feed
    # the last fold's spill slots, whose weights for out-of-range taps are 0).
    xp = jnp.pad(x, ((0, 0), (1, 1), (1, fi), (0, 0)))
    parts = []
    for kh in range(3):
        rows = xp[:, kh:kh + stride * (OH - 1) + 1:stride, :, :]    # (B,OH,Wp,Cin)
        a = rows[:, :, :P * fi, :].reshape(B, OH, P, fi * Cin)
        sp = rows[:, :, fi:fi + P * fi, :].reshape(B, OH, P, fi, Cin)
        sp = sp[:, :, :, :sp_w, :].reshape(B, OH, P, sp_w * Cin)
        parts.append(jnp.concatenate([a, sp], axis=-1))             # kh window
    slab = jnp.concatenate(parts, axis=-1)                          # (B,OH,P,3*fw*Cin)
    return slab.reshape(B * OH * P, 3 * (fi + sp_w) * Cin)


def _build_tap_weights(w_oihw, stride, fi, fo):
    """Block-Toeplitz weight: (3*(fi+3-stride)*Cin, fo*Cout), matching the slab."""
    Cout, Cin = w_oihw.shape[0], w_oihw.shape[1]
    fw = fi + 3 - stride
    KT, NL = 3 * fw * Cin, fo * Cout
    w_t = jnp.transpose(w_oihw, (2, 3, 1, 0))                       # (3, 3, Cin, Cout)
    wf = jnp.zeros((KT, NL), jnp.float32)
    for kh in range(3):
        for j in range(fo):
            for kw in range(3):
                pos = j * stride + kw          # column position inside the kh window
                r0 = kh * fw * Cin + pos * Cin
                wf = wf.at[r0:r0 + Cin, j * Cout:(j + 1) * Cout].set(w_t[kh, kw])
    return wf.astype(jnp.bfloat16)


def _conv_bn_relu_layer(x, w, gamma, beta, stride, conv_tile_rows, apply_tile_rows):
    """One conv3x3(bias=False) + BatchNorm2d(train stats) + ReLU stage, NHWC."""
    x = x.astype(jnp.bfloat16)
    B, H, W, Cin = x.shape
    Cout = w.shape[0]
    OH = (H - 1) // stride + 1
    OW = (W - 1) // stride + 1
    fo = _pick_fo(Cout, OW)
    fi = fo * stride
    P = OW // fo
    MR = B * OH * P
    M = B * OH * OW

    slab = _build_folded_slab(x, stride, OH, OW, fi, fo, P)
    w_full = _build_tap_weights(w, stride, fi, fo)

    # Pass 1: conv tiles + per-tile per-lane sum / sumsq.
    t1 = _pick_tile(MR, conv_tile_rows)
    conv_f, sums, sqs = _conv_stats_pallas(slab, w_full, t1)

    # Finalize global BN statistics (tiny cross-tile reduction) and fuse scale.
    ssum = jnp.sum(sums, axis=(0, 1)).reshape(fo, Cout).sum(axis=0)
    ssq = jnp.sum(sqs, axis=(0, 1)).reshape(fo, Cout).sum(axis=0)
    mean = ssum / M
    var = jnp.maximum(ssq / M - mean * mean, 0.0)       # biased batch variance
    scale = gamma * jax.lax.rsqrt(var + EPS)
    shift = beta - mean * scale
    scale_row = jnp.tile(scale, fo).reshape(1, fo * Cout).astype(jnp.float32)
    shift_row = jnp.tile(shift, fo).reshape(1, fo * Cout).astype(jnp.float32)

    # Pass 2: apply BN + ReLU (lane-dense, fully parallel).
    t2 = _pick_tile(MR, apply_tile_rows)
    y_f = _bn_relu_pallas(conv_f, scale_row, shift_row, t2)          # bf16

    # Unfold lanes back to NHWC (row-major compatible reshapes only).
    return y_f.reshape(B, OH, P, fo, Cout).reshape(B, OH, OW, Cout)


def patch_embed_stage1(x_nchw, params, conv_tile_rows=1024, apply_tile_rows=1024):
    """Forward of PatchEmbed_stage1. Input/output are NCHW (like PyTorch)."""
    # TODO(synk): BatchNorm running_mean/running_var are not produced/updated;
    # this implements the training-mode forward (batch statistics) only.
    x = jnp.transpose(x_nchw, (0, 2, 3, 1))                          # NCHW -> NHWC
    x = _conv_bn_relu_layer(x, params["w1"], params["g1"], params["b1"], 2,
                            conv_tile_rows, apply_tile_rows)
    x = _conv_bn_relu_layer(x, params["w2"], params["g2"], params["b2"], 1,
                            conv_tile_rows, apply_tile_rows)
    x = _conv_bn_relu_layer(x, params["w3"], params["g3"], params["b3"], 2,
                            conv_tile_rows, apply_tile_rows)
    return jnp.transpose(x, (0, 3, 1, 2)).astype(jnp.float32)        # NHWC -> NCHW


# ---------------------------------------------------------------------------
# Pure-JAX f32 reference (lax.conv) for correctness check
# ---------------------------------------------------------------------------
def _ref_block(x, w, gamma, beta, stride):
    y = jax.lax.conv_general_dilated(
        x, w, window_strides=(stride, stride), padding=((1, 1), (1, 1)),
        dimension_numbers=("NCHW", "OIHW", "NCHW"))
    mean = jnp.mean(y, axis=(0, 2, 3), keepdims=True)
    var = jnp.mean((y - mean) ** 2, axis=(0, 2, 3), keepdims=True)
    y = ((y - mean) * jax.lax.rsqrt(var + EPS)
         * gamma.reshape(1, -1, 1, 1) + beta.reshape(1, -1, 1, 1))
    return jnp.maximum(y, 0.0)


def patch_embed_stage1_ref(x, p):
    x = _ref_block(x, p["w1"], p["g1"], p["b1"], 2)
    x = _ref_block(x, p["w2"], p["g2"], p["b2"], 1)
    x = _ref_block(x, p["w3"], p["g3"], p["b3"], 2)
    return x


# ---------------------------------------------------------------------------
if __name__ == "__main__":
    B, Cin, H, W = 2, 3, 16, 16
    mid_embed_dim, embed_dim = 32, 64

    key = jax.random.PRNGKey(0)
    k = jax.random.split(key, 8)
    params = {
        "w1": 0.1 * jax.random.normal(k[0], (mid_embed_dim, Cin, 3, 3), jnp.float32),
        "w2": 0.1 * jax.random.normal(k[1], (mid_embed_dim, mid_embed_dim, 3, 3), jnp.float32),
        "w3": 0.1 * jax.random.normal(k[2], (embed_dim, mid_embed_dim, 3, 3), jnp.float32),
        "g1": 1.0 + 0.1 * jax.random.normal(k[3], (mid_embed_dim,), jnp.float32),
        "b1": 0.1 * jax.random.normal(k[4], (mid_embed_dim,), jnp.float32),
        "g2": 1.0 + 0.1 * jax.random.normal(k[5], (mid_embed_dim,), jnp.float32),
        "b2": 0.1 * jax.random.normal(k[6], (mid_embed_dim,), jnp.float32),
        "g3": jnp.ones((embed_dim,), jnp.float32),
        "b3": jnp.zeros((embed_dim,), jnp.float32),
    }

    # Check 1: small shapes (single-tile grids).
    x = jax.random.normal(jax.random.PRNGKey(1), (B, Cin, H, W), jnp.float32)
    out = jax.block_until_ready(jax.jit(patch_embed_stage1)(x, params))
    assert out.shape == (B, embed_dim, H // 4, W // 4), out.shape
    ref = jax.block_until_ready(jax.jit(patch_embed_stage1_ref)(x, params))
    # Tolerance accounts for bf16 MXU operands / bf16 inter-stage activations.
    err = float(jnp.max(jnp.abs(out - ref)))
    assert jnp.allclose(out, ref, atol=3e-2, rtol=3e-2), err

    # Check 2: larger input with small tile overrides to exercise multi-tile
    # grids in both the conv+stats pass and the BN-apply pass.
    x2 = jax.random.normal(jax.random.PRNGKey(2), (B, Cin, 64, 64), jnp.float32)
    fwd2 = jax.jit(functools.partial(patch_embed_stage1,
                                     conv_tile_rows=128, apply_tile_rows=64))
    out2 = jax.block_until_ready(fwd2(x2, params))
    assert out2.shape == (B, embed_dim, 16, 16), out2.shape
    ref2 = jax.block_until_ready(jax.jit(patch_embed_stage1_ref)(x2, params))
    err2 = float(jnp.max(jnp.abs(out2 - ref2)))
    assert jnp.allclose(out2, ref2, atol=3e-2, rtol=3e-2), err2

    print("KERNEL_OK")
</pallas_src>

<mosaic_0001>
module attributes {stable_mosaic.version = 11 : i64} {
  func.func @_conv_stats_kernel(%arg0: i32, %arg1: memref<32x81xbf16, #tpu.memory_space<vmem>>, %arg2: memref<81x128xbf16, #tpu.memory_space<vmem>>, %arg3: memref<32x128xf32, #tpu.memory_space<vmem>>, %arg4: memref<1x1x128xf32, #tpu.memory_space<vmem>>, %arg5: memref<1x1x128xf32, #tpu.memory_space<vmem>>) attributes {dimension_semantics = [#tpu.dimension_semantics<parallel>], iteration_bounds = array<i64: 1>, scalar_prefetch = 0 : i64, scratch_operands = 0 : i64, tpu.core_type = #tpu.core_type<tc>, window_params = [{transform_indices = @transform_0, window_bounds = array<i64: 32, 81>}, {pipeline_mode = #tpu.pipeline_mode<synchronous>, transform_indices = @transform_1, window_bounds = array<i64: 81, 128>}, {transform_indices = @transform_2, window_bounds = array<i64: 32, 128>}, {transform_indices = @transform_3, window_bounds = array<i64: 1, 1, 128>}, {transform_indices = @transform_4, window_bounds = array<i64: 1, 1, 128>}]} {
    %c0 = arith.constant 0 : index
    %c0_0 = arith.constant 0 : index
    %0 = vector.load %arg1[%c0, %c0_0] : memref<32x81xbf16, #tpu.memory_space<vmem>>, vector<32x81xbf16>
    %c0_1 = arith.constant 0 : index
    %c0_2 = arith.constant 0 : index
    %1 = vector.load %arg2[%c0_1, %c0_2] : memref<81x128xbf16, #tpu.memory_space<vmem>>, vector<81x128xbf16>
    %cst = arith.constant dense<0.000000e+00> : vector<32x128xf32>
    %2 = tpu.matmul %0, %1, %cst {dimension_numbers = #tpu.dot_dimension_numbers<[1], [0], [0], [1], [0, 0, 1, 1], [], []>} : vector<32x81xbf16>, vector<81x128xbf16>, vector<32x128xf32> -> vector<32x128xf32>
    %c0_3 = arith.constant 0 : index
    %c0_4 = arith.constant 0 : index
    %3 = vector.load %arg3[%c0_3, %c0_4] : memref<32x128xf32, #tpu.memory_space<vmem>>, vector<32x128xf32>
    tpu.vector_store %arg3[%c0_3, %c0_4], %2 {strides = array<i32>} : memref<32x128xf32, #tpu.memory_space<vmem>>, vector<32x128xf32>,
    %cst_5 = arith.constant dense<0.000000e+00> : vector<128xf32>
    %4 = vector.multi_reduction <add>, %2, %cst_5 [0] : vector<32x128xf32> to vector<128xf32>
    %5 = vector.shape_cast %4 : vector<128xf32> to vector<1x128xf32>
    %6 = vector.shape_cast %5 : vector<1x128xf32> to vector<1x1x128xf32>
    %c0_6 = arith.constant 0 : index
    %c0_7 = arith.constant 0 : index
    %c0_8 = arith.constant 0 : index
    %7 = vector.load %arg4[%c0_6, %c0_7, %c0_8] : memref<1x1x128xf32, #tpu.memory_space<vmem>>, vector<1x1x128xf32>
    tpu.vector_store %arg4[%c0_6, %c0_7, %c0_8], %6 {strides = array<i32>} : memref<1x1x128xf32, #tpu.memory_space<vmem>>, vector<1x1x128xf32>,
    %8 = arith.mulf %2, %2 : vector<32x128xf32>
    %cst_9 = arith.constant dense<0.000000e+00> : vector<128xf32>
    %9 = vector.multi_reduction <add>, %8, %cst_9 [0] : vector<32x128xf32> to vector<128xf32>
    %10 = vector.shape_cast %9 : vector<128xf32> to vector<1x128xf32>
    %11 = vector.shape_cast %10 : vector<1x128xf32> to vector<1x1x128xf32>
    %c0_10 = arith.constant 0 : index
    %c0_11 = arith.constant 0 : index
    %c0_12 = arith.constant 0 : index
    %12 = vector.load %arg5[%c0_10, %c0_11, %c0_12] : memref<1x1x128xf32, #tpu.memory_space<vmem>>, vector<1x1x128xf32>
    tpu.vector_store %arg5[%c0_10, %c0_11, %c0_12], %11 {strides = array<i32>} : memref<1x1x128xf32, #tpu.memory_space<vmem>>, vector<1x1x128xf32>,
    return
  }
  func.func @transform_0(%arg0: i32) -> (i32, i32) {
    %c0_i32 = arith.constant 0 : i32
    %c0_i32_0 = arith.constant 0 : i32
    return %arg0, %c0_i32 : i32, i32
  }
  func.func @transform_1(%arg0: i32) -> (i32, i32) {
    %c0_i32 = arith.constant 0 : i32
    %c0_i32_0 = arith.constant 0 : i32
    %c0_i32_1 = arith.constant 0 : i32
    return %c0_i32, %c0_i32_0 : i32, i32
  }
  func.func @transform_2(%arg0: i32) -> (i32, i32) {
    %c0_i32 = arith.constant 0 : i32
    %c0_i32_0 = arith.constant 0 : i32
    return %arg0, %c0_i32 : i32, i32
  }
  func.func @transform_3(%arg0: i32) -> (i32, i32, i32) {
    %c0_i32 = arith.constant 0 : i32
    %c0_i32_0 = arith.constant 0 : i32
    %c0_i32_1 = arith.constant 0 : i32
    return %arg0, %c0_i32, %c0_i32_0 : i32, i32, i32
  }
  func.func @transform_4(%arg0: i32) -> (i32, i32, i32) {
    %c0_i32 = arith.constant 0 : i32
    %c0_i32_0 = arith.constant 0 : i32
    %c0_i32_1 = arith.constant 0 : i32
    return %arg0, %c0_i32, %c0_i32_0 : i32, i32, i32
  }
}

module attributes {stable_mosaic.version = 11 : i64} {
  func.func @_bn_relu_kernel(%arg0: i32, %arg1: memref<32x128xf32, #tpu.memory_space<vmem>>, %arg2: memref<1x128xf32, #tpu.memory_space<vmem>>, %arg3: memref<1x128xf32, #tpu.memory_space<vmem>>, %arg4: memref<32x128xbf16, #tpu.memory_space<vmem>>) attributes {dimension_semantics = [#tpu.dimension_semantics<parallel>], iteration_bounds = array<i64: 1>, scalar_prefetch = 0 : i64, scratch_operands = 0 : i64, tpu.core_type = #tpu.core_type<tc>, window_params = [{transform_indices = @transform_0, window_bounds = array<i64: 32, 128>}, {pipeline_mode = #tpu.pipeline_mode<synchronous>, transform_indices = @transform_1, window_bounds = array<i64: 1, 128>}, {pipeline_mode = #tpu.pipeline_mode<synchronous>, transform_indices = @transform_2, window_bounds = array<i64: 1, 128>}, {transform_indices = @transform_3, window_bounds = array<i64: 32, 128>}]} {
    %c0 = arith.constant 0 : index
    %c0_0 = arith.constant 0 : index
    %0 = vector.load %arg1[%c0, %c0_0] : memref<32x128xf32, #tpu.memory_space<vmem>>, vector<32x128xf32>
    %c0_1 = arith.constant 0 : index
    %c0_2 = arith.constant 0 : index
    %1 = vector.load %arg2[%c0_1, %c0_2] : memref<1x128xf32, #tpu.memory_space<vmem>>, vector<1x128xf32>
    %2 = vector.broadcast %1 : vector<1x128xf32> to vector<32x128xf32>
    %3 = arith.mulf %0, %2 : vector<32x128xf32>
    %c0_3 = arith.constant 0 : index
    %c0_4 = arith.constant 0 : index
    %4 = vector.load %arg3[%c0_3, %c0_4] : memref<1x128xf32, #tpu.memory_space<vmem>>, vector<1x128xf32>
    %5 = vector.broadcast %4 : vector<1x128xf32> to vector<32x128xf32>
    %6 = arith.addf %3, %5 : vector<32x128xf32>
    %cst = arith.constant 0.000000e+00 : f32
    %7 = vector.broadcast %cst : f32 to vector<32x128xf32>
    %8 = arith.maximumf %6, %7 : vector<32x128xf32>
    %9 = arith.truncf %8 : vector<32x128xf32> to vector<32x128xbf16>
    %c0_5 = arith.constant 0 : index
    %c0_6 = arith.constant 0 : index
    %10 = vector.load %arg4[%c0_5, %c0_6] : memref<32x128xbf16, #tpu.memory_space<vmem>>, vector<32x128xbf16>
    tpu.vector_store %arg4[%c0_5, %c0_6], %9 {strides = array<i32>} : memref<32x128xbf16, #tpu.memory_space<vmem>>, vector<32x128xbf16>,
    return
  }
  func.func @transform_0(%arg0: i32) -> (i32, i32) {
    %c0_i32 = arith.constant 0 : i32
    %c0_i32_0 = arith.constant 0 : i32
    return %arg0, %c0_i32 : i32, i32
  }
  func.func @transform_1(%arg0: i32) -> (i32, i32) {
    %c0_i32 = arith.constant 0 : i32
    %c0_i32_0 = arith.constant 0 : i32
    %c0_i32_1 = arith.constant 0 : i32
    return %c0_i32, %c0_i32_0 : i32, i32
  }
  func.func @transform_2(%arg0: i32) -> (i32, i32) {
    %c0_i32 = arith.constant 0 : i32
    %c0_i32_0 = arith.constant 0 : i32
    %c0_i32_1 = arith.constant 0 : i32
    return %c0_i32, %c0_i32_0 : i32, i32
  }
  func.func @transform_3(%arg0: i32) -> (i32, i32) {
    %c0_i32 = arith.constant 0 : i32
    %c0_i32_0 = arith.constant 0 : i32
    return %arg0, %c0_i32 : i32, i32
  }
}

module attributes {stable_mosaic.version = 11 : i64} {
  func.func @_conv_stats_kernel(%arg0: i32, %arg1: memref<32x576xbf16, #tpu.memory_space<vmem>>, %arg2: memref<576x128xbf16, #tpu.memory_space<vmem>>, %arg3: memref<32x128xf32, #tpu.memory_space<vmem>>, %arg4: memref<1x1x128xf32, #tpu.memory_space<vmem>>, %arg5: memref<1x1x128xf32, #tpu.memory_space<vmem>>) attributes {dimension_semantics = [#tpu.dimension_semantics<parallel>], iteration_bounds = array<i64: 1>, scalar_prefetch = 0 : i64, scratch_operands = 0 : i64, tpu.core_type = #tpu.core_type<tc>, window_params = [{transform_indices = @transform_0, window_bounds = array<i64: 32, 576>}, {pipeline_mode = #tpu.pipeline_mode<synchronous>, transform_indices = @transform_1, window_bounds = array<i64: 576, 128>}, {transform_indices = @transform_2, window_bounds = array<i64: 32, 128>}, {transform_indices = @transform_3, window_bounds = array<i64: 1, 1, 128>}, {transform_indices = @transform_4, window_bounds = array<i64: 1, 1, 128>}]} {
    %c0 = arith.constant 0 : index
    %c0_0 = arith.constant 0 : index
    %0 = vector.load %arg1[%c0, %c0_0] : memref<32x576xbf16, #tpu.memory_space<vmem>>, vector<32x576xbf16>
    %c0_1 = arith.constant 0 : index
    %c0_2 = arith.constant 0 : index
    %1 = vector.load %arg2[%c0_1, %c0_2] : memref<576x128xbf16, #tpu.memory_space<vmem>>, vector<576x128xbf16>
    %cst = arith.constant dense<0.000000e+00> : vector<32x128xf32>
    %2 = tpu.matmul %0, %1, %cst {dimension_numbers = #tpu.dot_dimension_numbers<[1], [0], [0], [1], [0, 0, 1, 1], [], []>} : vector<32x576xbf16>, vector<576x128xbf16>, vector<32x128xf32> -> vector<32x128xf32>
    %c0_3 = arith.constant 0 : index
    %c0_4 = arith.constant 0 : index
    %3 = vector.load %arg3[%c0_3, %c0_4] : memref<32x128xf32, #tpu.memory_space<vmem>>, vector<32x128xf32>
    tpu.vector_store %arg3[%c0_3, %c0_4], %2 {strides = array<i32>} : memref<32x128xf32, #tpu.memory_space<vmem>>, vector<32x128xf32>,
    %cst_5 = arith.constant dense<0.000000e+00> : vector<128xf32>
    %4 = vector.multi_reduction <add>, %2, %cst_5 [0] : vector<32x128xf32> to vector<128xf32>
    %5 = vector.shape_cast %4 : vector<128xf32> to vector<1x128xf32>
    %6 = vector.shape_cast %5 : vector<1x128xf32> to vector<1x1x128xf32>
    %c0_6 = arith.constant 0 : index
    %c0_7 = arith.constant 0 : index
    %c0_8 = arith.constant 0 : index
    %7 = vector.load %arg4[%c0_6, %c0_7, %c0_8] : memref<1x1x128xf32, #tpu.memory_space<vmem>>, vector<1x1x128xf32>
    tpu.vector_store %arg4[%c0_6, %c0_7, %c0_8], %6 {strides = array<i32>} : memref<1x1x128xf32, #tpu.memory_space<vmem>>, vector<1x1x128xf32>,
    %8 = arith.mulf %2, %2 : vector<32x128xf32>
    %cst_9 = arith.constant dense<0.000000e+00> : vector<128xf32>
    %9 = vector.multi_reduction <add>, %8, %cst_9 [0] : vector<32x128xf32> to vector<128xf32>
    %10 = vector.shape_cast %9 : vector<128xf32> to vector<1x128xf32>
    %11 = vector.shape_cast %10 : vector<1x128xf32> to vector<1x1x128xf32>
    %c0_10 = arith.constant 0 : index
    %c0_11 = arith.constant 0 : index
    %c0_12 = arith.constant 0 : index
    %12 = vector.load %arg5[%c0_10, %c0_11, %c0_12] : memref<1x1x128xf32, #tpu.memory_space<vmem>>, vector<1x1x128xf32>
    tpu.vector_store %arg5[%c0_10, %c0_11, %c0_12], %11 {strides = array<i32>} : memref<1x1x128xf32, #tpu.memory_space<vmem>>, vector<1x1x128xf32>,
    return
  }
  func.func @transform_0(%arg0: i32) -> (i32, i32) {
    %c0_i32 = arith.constant 0 : i32
    %c0_i32_0 = arith.constant 0 : i32
    return %arg0, %c0_i32 : i32, i32
  }
  func.func @transform_1(%arg0: i32) -> (i32, i32) {
    %c0_i32 = arith.constant 0 : i32
    %c0_i32_0 = arith.constant 0 : i32
    %c0_i32_1 = arith.constant 0 : i32
    return %c0_i32, %c0_i32_0 : i32, i32
  }
  func.func @transform_2(%arg0: i32) -> (i32, i32) {
    %c0_i32 = arith.constant 0 : i32
    %c0_i32_0 = arith.constant 0 : i32
    return %arg0, %c0_i32 : i32, i32
  }
  func.func @transform_3(%arg0: i32) -> (i32, i32, i32) {
    %c0_i32 = arith.constant 0 : i32
    %c0_i32_0 = arith.constant 0 : i32
    %c0_i32_1 = arith.constant 0 : i32
    return %arg0, %c0_i32, %c0_i32_0 : i32, i32, i32
  }
  func.func @transform_4(%arg0: i32) -> (i32, i32, i32) {
    %c0_i32 = arith.constant 0 : i32
    %c0_i32_0 = arith.constant 0 : i32
    %c0_i32_1 = arith.constant 0 : i32
    return %arg0, %c0_i32, %c0_i32_0 : i32, i32, i32
  }
}

module attributes {stable_mosaic.version = 11 : i64} {
  func.func @_conv_stats_kernel(%arg0: i32, %arg1: memref<16x480xbf16, #tpu.memory_space<vmem>>, %arg2: memref<480x128xbf16, #tpu.memory_space<vmem>>, %arg3: memref<16x128xf32, #tpu.memory_space<vmem>>, %arg4: memref<1x1x128xf32, #tpu.memory_space<vmem>>, %arg5: memref<1x1x128xf32, #tpu.memory_space<vmem>>) attributes {dimension_semantics = [#tpu.dimension_semantics<parallel>], iteration_bounds = array<i64: 1>, scalar_prefetch = 0 : i64, scratch_operands = 0 : i64, tpu.core_type = #tpu.core_type<tc>, window_params = [{transform_indices = @transform_0, window_bounds = array<i64: 16, 480>}, {pipeline_mode = #tpu.pipeline_mode<synchronous>, transform_indices = @transform_1, window_bounds = array<i64: 480, 128>}, {transform_indices = @transform_2, window_bounds = array<i64: 16, 128>}, {transform_indices = @transform_3, window_bounds = array<i64: 1, 1, 128>}, {transform_indices = @transform_4, window_bounds = array<i64: 1, 1, 128>}]} {
    %c0 = arith.constant 0 : index
    %c0_0 = arith.constant 0 : index
    %0 = vector.load %arg1[%c0, %c0_0] : memref<16x480xbf16, #tpu.memory_space<vmem>>, vector<16x480xbf16>
    %c0_1 = arith.constant 0 : index
    %c0_2 = arith.constant 0 : index
    %1 = vector.load %arg2[%c0_1, %c0_2] : memref<480x128xbf16, #tpu.memory_space<vmem>>, vector<480x128xbf16>
    %cst = arith.constant dense<0.000000e+00> : vector<16x128xf32>
    %2 = tpu.matmul %0, %1, %cst {dimension_numbers = #tpu.dot_dimension_numbers<[1], [0], [0], [1], [0, 0, 1, 1], [], []>} : vector<16x480xbf16>, vector<480x128xbf16>, vector<16x128xf32> -> vector<16x128xf32>
    %c0_3 = arith.constant 0 : index
    %c0_4 = arith.constant 0 : index
    %3 = vector.load %arg3[%c0_3, %c0_4] : memref<16x128xf32, #tpu.memory_space<vmem>>, vector<16x128xf32>
    tpu.vector_store %arg3[%c0_3, %c0_4], %2 {strides = array<i32>} : memref<16x128xf32, #tpu.memory_space<vmem>>, vector<16x128xf32>,
    %cst_5 = arith.constant dense<0.000000e+00> : vector<128xf32>
    %4 = vector.multi_reduction <add>, %2, %cst_5 [0] : vector<16x128xf32> to vector<128xf32>
    %5 = vector.shape_cast %4 : vector<128xf32> to vector<1x128xf32>
    %6 = vector.shape_cast %5 : vector<1x128xf32> to vector<1x1x128xf32>
    %c0_6 = arith.constant 0 : index
    %c0_7 = arith.constant 0 : index
    %c0_8 = arith.constant 0 : index
    %7 = vector.load %arg4[%c0_6, %c0_7, %c0_8] : memref<1x1x128xf32, #tpu.memory_space<vmem>>, vector<1x1x128xf32>
    tpu.vector_store %arg4[%c0_6, %c0_7, %c0_8], %6 {strides = array<i32>} : memref<1x1x128xf32, #tpu.memory_space<vmem>>, vector<1x1x128xf32>,
    %8 = arith.mulf %2, %2 : vector<16x128xf32>
    %cst_9 = arith.constant dense<0.000000e+00> : vector<128xf32>
    %9 = vector.multi_reduction <add>, %8, %cst_9 [0] : vector<16x128xf32> to vector<128xf32>
    %10 = vector.shape_cast %9 : vector<128xf32> to vector<1x128xf32>
    %11 = vector.shape_cast %10 : vector<1x128xf32> to vector<1x1x128xf32>
    %c0_10 = arith.constant 0 : index
    %c0_11 = arith.constant 0 : index
    %c0_12 = arith.constant 0 : index
    %12 = vector.load %arg5[%c0_10, %c0_11, %c0_12] : memref<1x1x128xf32, #tpu.memory_space<vmem>>, vector<1x1x128xf32>
    tpu.vector_store %arg5[%c0_10, %c0_11, %c0_12], %11 {strides = array<i32>} : memref<1x1x128xf32, #tpu.memory_space<vmem>>, vector<1x1x128xf32>,
    return
  }
  func.func @transform_0(%arg0: i32) -> (i32, i32) {
    %c0_i32 = arith.constant 0 : i32
    %c0_i32_0 = arith.constant 0 : i32
    return %arg0, %c0_i32 : i32, i32
  }
  func.func @transform_1(%arg0: i32) -> (i32, i32) {
    %c0_i32 = arith.constant 0 : i32
    %c0_i32_0 = arith.constant 0 : i32
    %c0_i32_1 = arith.constant 0 : i32
    return %c0_i32, %c0_i32_0 : i32, i32
  }
  func.func @transform_2(%arg0: i32) -> (i32, i32) {
    %c0_i32 = arith.constant 0 : i32
    %c0_i32_0 = arith.constant 0 : i32
    return %arg0, %c0_i32 : i32, i32
  }
  func.func @transform_3(%arg0: i32) -> (i32, i32, i32) {
    %c0_i32 = arith.constant 0 : i32
    %c0_i32_0 = arith.constant 0 : i32
    %c0_i32_1 = arith.constant 0 : i32
    return %arg0, %c0_i32, %c0_i32_0 : i32, i32, i32
  }
  func.func @transform_4(%arg0: i32) -> (i32, i32, i32) {
    %c0_i32 = arith.constant 0 : i32
    %c0_i32_0 = arith.constant 0 : i32
    %c0_i32_1 = arith.constant 0 : i32
    return %arg0, %c0_i32, %c0_i32_0 : i32, i32, i32
  }
}

module attributes {stable_mosaic.version = 11 : i64} {
  func.func @_bn_relu_kernel(%arg0: i32, %arg1: memref<16x128xf32, #tpu.memory_space<vmem>>, %arg2: memref<1x128xf32, #tpu.memory_space<vmem>>, %arg3: memref<1x128xf32, #tpu.memory_space<vmem>>, %arg4: memref<16x128xbf16, #tpu.memory_space<vmem>>) attributes {dimension_semantics = [#tpu.dimension_semantics<parallel>], iteration_bounds = array<i64: 1>, scalar_prefetch = 0 : i64, scratch_operands = 0 : i64, tpu.core_type = #tpu.core_type<tc>, window_params = [{transform_indices = @transform_0, window_bounds = array<i64: 16, 128>}, {pipeline_mode = #tpu.pipeline_mode<synchronous>, transform_indices = @transform_1, window_bounds = array<i64: 1, 128>}, {pipeline_mode = #tpu.pipeline_mode<synchronous>, transform_indices = @transform_2, window_bounds = array<i64: 1, 128>}, {transform_indices = @transform_3, window_bounds = array<i64: 16, 128>}]} {
    %c0 = arith.constant 0 : index
    %c0_0 = arith.constant 0 : index
    %0 = vector.load %arg1[%c0, %c0_0] : memref<16x128xf32, #tpu.memory_space<vmem>>, vector<16x128xf32>
    %c0_1 = arith.constant 0 : index
    %c0_2 = arith.constant 0 : index
    %1 = vector.load %arg2[%c0_1, %c0_2] : memref<1x128xf32, #tpu.memory_space<vmem>>, vector<1x128xf32>
    %2 = vector.broadcast %1 : vector<1x128xf32> to vector<16x128xf32>
    %3 = arith.mulf %0, %2 : vector<16x128xf32>
    %c0_3 = arith.constant 0 : index
    %c0_4 = arith.constant 0 : index
    %4 = vector.load %arg3[%c0_3, %c0_4] : memref<1x128xf32, #tpu.memory_space<vmem>>, vector<1x128xf32>
    %5 = vector.broadcast %4 : vector<1x128xf32> to vector<16x128xf32>
    %6 = arith.addf %3, %5 : vector<16x128xf32>
    %cst = arith.constant 0.000000e+00 : f32
    %7 = vector.broadcast %cst : f32 to vector<16x128xf32>
    %8 = arith.maximumf %6, %7 : vector<16x128xf32>
    %9 = arith.truncf %8 : vector<16x128xf32> to vector<16x128xbf16>
    %c0_5 = arith.constant 0 : index
    %c0_6 = arith.constant 0 : index
    %10 = vector.load %arg4[%c0_5, %c0_6] : memref<16x128xbf16, #tpu.memory_space<vmem>>, vector<16x128xbf16>
    tpu.vector_store %arg4[%c0_5, %c0_6], %9 {strides = array<i32>} : memref<16x128xbf16, #tpu.memory_space<vmem>>, vector<16x128xbf16>,
    return
  }
  func.func @transform_0(%arg0: i32) -> (i32, i32) {
    %c0_i32 = arith.constant 0 : i32
    %c0_i32_0 = arith.constant 0 : i32
    return %arg0, %c0_i32 : i32, i32
  }
  func.func @transform_1(%arg0: i32) -> (i32, i32) {
    %c0_i32 = arith.constant 0 : i32
    %c0_i32_0 = arith.constant 0 : i32
    %c0_i32_1 = arith.constant 0 : i32
    return %c0_i32, %c0_i32_0 : i32, i32
  }
  func.func @transform_2(%arg0: i32) -> (i32, i32) {
    %c0_i32 = arith.constant 0 : i32
    %c0_i32_0 = arith.constant 0 : i32
    %c0_i32_1 = arith.constant 0 : i32
    return %c0_i32, %c0_i32_0 : i32, i32
  }
  func.func @transform_3(%arg0: i32) -> (i32, i32) {
    %c0_i32 = arith.constant 0 : i32
    %c0_i32_0 = arith.constant 0 : i32
    return %arg0, %c0_i32 : i32, i32
  }
}

</mosaic_0001>

<llo_original>
// kernel: tile.33
$region0: #{tile.33}
  #allocation0 [shape = 's32[1]{0}', space=sflag, size = 0x4, scoped, tag = 'scoped memory for tile.33']
  %s0 = inlined_call_operand.vmem [shape: f32[32], index: 0, kind: input, shape index: {}]
  %s1 = inlined_call_operand.vmem [shape: f32[4,32], index: 1, kind: output, shape index: {}]
  // Predicated region
  $region2: #{tile.33} parent=0 // pred_check
    _
  $region3: #{tile.33} parent=0 // pred_check_branch
    %3 = sbr.rel (0) target = $region5
  $region4: #{tile.33} parent=0 // pred_region
    _
  $region5: #{tile.33} parent=0 // pred_fallthru
    _
  %v4 = vld [vmem:[%s0] ss:$0 sm:$0xff]
  %5 = vst [vmem:[%s1] sm:$0xf] %v4

// kernel: tile.34
$region0: #{tile.34}
  %s0 = inlined_call_operand.vmem [shape: f32[4,32], index: 0, kind: input, shape index: {}]
  %s1 = inlined_call_operand.vmem [shape: f32[1,128], index: 1, kind: output, shape index: {}]
  $region1: #{tile.34} parent=0
    #allocation0 [shape = 'u8[4096]{0}', space=vmem, size = 0x1000, scoped, tag = 'scoped mem for output reshape']
    #allocation1 [shape = 'u8[4096]{0}', space=vmem, size = 0x1000, scoped, tag = 'scoped mem for input reshape']
    %s3 = sshll.u32 1, 4
    %s4 = ssub.s32 %s3, 1
    %v5 = vld [vmem:[%s0] sm:%s4]
    %6 = vst [vmem:[#allocation1] sm:%s4] %v5
    %v7 = vld [vmem:[#allocation1] sm:$0x1]
    %vm8 = vcmask 261120
    %9 = vst.msk [vmem:[#allocation0] sm:$0x1] %vm8, %v7
    %s10 = scalar_lea.vmem [#allocation1], 3
    %v11 = vld [vmem:[%s10] sm:$0x1]
    %12 = vrot.lane.b32.xlu0 %v11, 96
    %v13 = vpop.permute.xlu0 %12
    %vm14 = vcmask 1048320
    %15 = vst.msk [vmem:[#allocation0] sm:$0x1] %vm14, %v13
    %s16 = scalar_lea.vmem [#allocation1], 2
    %v17 = vld [vmem:[%s16] sm:$0x1]
    %18 = vrot.lane.b32.xlu0 %v17, 64
    %v19 = vpop.permute.xlu0 %18
    %vm20 = vcmask 785920
    %21 = vst.msk [vmem:[#allocation0] sm:$0x1] %vm20, %v19
    %s22 = scalar_lea.vmem [#allocation1], 1
    %v23 = vld [vmem:[%s22] sm:$0x1]
    %24 = vrot.lane.b32.xlu0 %v23, 32
    %v25 = vpop.permute.xlu0 %24
    %vm26 = vcmask 523520
    %27 = vst.msk [vmem:[#allocation0] sm:$0x1] %vm26, %v25
    %s29 = sshll.u32 1, 1
    %s30 = ssub.s32 %s29, 1
    %v32 = vld [vmem:[#allocation0] sm:%s30]
    %s33 = sshll.u32 1, 1
    %s34 = ssub.s32 %s33, 1
    %35 = vst [vmem:[%s1] sm:%s34] %v32

// kernel: patch_embed_stage1.7
$region0: #{patch_embed_stage1.7}
  #allocation0 [shape = 'u32[]', space=smem, size = 0x4, offset = 0x4, fixed_abs, tag = 'smem constant byte address 0x4 - core index']
  #allocation1 [shape = 'u32[144,128]{1,0:T(1,128)}', space=vmem, size = 0x12000, scoped, tag = 'internal scratch']
  %s0 = inlined_call_operand.vmem [shape: f32[32,128], index: 0, kind: input, shape index: {}]
  %s1 = inlined_call_operand.vmem [shape: f32[1,128], index: 1, kind: input, shape index: {}]
  %s2 = inlined_call_operand.vmem [shape: f32[1,128], index: 2, kind: input, shape index: {}]
  %s3 = inlined_call_operand.vmem [shape: bf16[32,128], index: 3, kind: output, shape index: {}]
  %s4 = sld [smem:[#allocation0]]
  $region22: #{patch_embed_stage1.7} parent=0
    _
  %s6 = ssub.s32 1, %s4
  %s7 = scalar_select 0, %s6, %s4
  // Predicated region
  $region2: #{patch_embed_stage1.7} parent=0 // pred_check
    _
  $region3: #{patch_embed_stage1.7} parent=0 // pred_check_branch
    %9 = sbr.rel (0) target = $region5
  $region4: #{patch_embed_stage1.7} parent=0 // pred_region
    _
  $region5: #{patch_embed_stage1.7} parent=0 // pred_fallthru
    _
  // Predicated region
  $region6: #{patch_embed_stage1.7} parent=0 // pred_check
    _
  $region7: #{patch_embed_stage1.7} parent=0 // pred_check_branch
    %11 = sbr.rel (0) target = $region9
  $region8: #{patch_embed_stage1.7} parent=0 // pred_region
    _
  $region9: #{patch_embed_stage1.7} parent=0 // pred_fallthru
    _
  // Predicated region
  $region10: #{patch_embed_stage1.7} parent=0 // pred_check
    _
  $region11: #{patch_embed_stage1.7} parent=0 // pred_check_branch
    %13 = sbr.rel (0) target = $region13
  $region12: #{patch_embed_stage1.7} parent=0 // pred_region
    _
  $region13: #{patch_embed_stage1.7} parent=0 // pred_fallthru
    _
  %v14 = vld [vmem:[%s0] sm:$0xff]
  %v15 = vld [vmem:[%s0 + $0x8] sm:$0xff]
  %v16 = vld [vmem:[%s0 + $0x10] sm:$0xff]
  %v17 = vld [vmem:[%s0 + $0x18] sm:$0xff]
  %v18 = vld [vmem:[%s1] sm:$0x1]
  %v20 = vlaneseq
  %v21 = vshrl.u32 %v20, 7
  %v22 = vsub.s32 0, %v21
  %v23 = vrot.slane %v18, %v22
  %v25 = vmul.f32 %v14, %v23
  %v26 = vmul.f32 %v15, %v23
  %v27 = vmul.f32 %v16, %v23
  %v28 = vmul.f32 %v17, %v23
  %v29 = vld [vmem:[%s2] sm:$0x1]
  %v31 = vlaneseq
  %v32 = vshrl.u32 %v31, 7
  %v33 = vsub.s32 0, %v32
  %v34 = vrot.slane %v29, %v33
  %v36 = vadd.f32 %v25, %v34
  %v37 = vadd.f32 %v26, %v34
  %v38 = vadd.f32 %v27, %v34
  %v39 = vadd.f32 %v28, %v34
  %v40 = vmax.f32 %v36, 0.0
  %v41 = vmax.f32 %v37, 0.0
  %v42 = vmax.f32 %v38, 0.0
  %v43 = vmax.f32 %v39, 0.0
  %v44 = vpack.c.bf16 %v41, %v40
  %v45 = vpack.c.bf16 %v43, %v42
  %v48 = vunpack.c.l.b16 %v44
  %v49 = vunpack.c.h.b16 %v44
  %v50 = vunpack.c.l.b16 %v45
  %v51 = vunpack.c.h.b16 %v45
  %v52 = vpack.c.b16 %v48, %v48
  %v53 = vpack.c.b16 %v49, %v49
  %v54 = vpack.c.b16 %v50, %v50
  %v55 = vpack.c.b16 %v51, %v51
  %60 = vst [vmem:[%s3] sm:$0xf] %v52
  %61 = vst [vmem:[%s3 + $0x4] sm:$0xf] %v53
  %62 = vst [vmem:[%s3 + $0x8] sm:$0xf] %v54
  %63 = vst [vmem:[%s3 + $0xc] sm:$0xf] %v55
  // Predicated region
  $region14: #{patch_embed_stage1.7} parent=0 // pred_check
    _
  $region15: #{patch_embed_stage1.7} parent=0 // pred_check_branch
    %65 = sbr.rel (0) target = $region17
  $region16: #{patch_embed_stage1.7} parent=0 // pred_region
    _
  $region17: #{patch_embed_stage1.7} parent=0 // pred_fallthru
    _
  // Predicated region
  $region18: #{patch_embed_stage1.7} parent=0 // pred_check
    _
  $region19: #{patch_embed_stage1.7} parent=0 // pred_check_branch
    %67 = sbr.rel (0) target = $region21
  $region20: #{patch_embed_stage1.7} parent=0 // pred_region
    _
  $region21: #{patch_embed_stage1.7} parent=0 // pred_fallthru
    _

// kernel: patch_embed_stage1.6
$region0: #{patch_embed_stage1.6}
  #allocation0 [shape = 'u32[]', space=smem, size = 0x4, offset = 0x4, fixed_abs, tag = 'smem constant byte address 0x4 - core index']
  #allocation1 [shape = 'u32[144,128]{1,0:T(1,128)}', space=vmem, size = 0x12000, scoped, tag = 'internal scratch']
  %s0 = inlined_call_operand.vmem [shape: bf16[32,81], index: 0, kind: input, shape index: {}]
  %s1 = inlined_call_operand.vmem [shape: bf16[81,128], index: 1, kind: input, shape index: {}]
  %s2 = inlined_call_operand.vmem [shape: f32[32,128], index: 2, kind: output, shape index: {0}]
  %s3 = inlined_call_operand.vmem [shape: f32[1,1,128], index: 3, kind: output, shape index: {1}]
  %s4 = inlined_call_operand.vmem [shape: f32[1,1,128], index: 4, kind: output, shape index: {2}]
  %5 = xla_tuple %s2, %s3, %s4
  %s6 = sld [smem:[#allocation0]]
  $region34: #{patch_embed_stage1.6} parent=0
    _
  %s8 = ssub.s32 1, %s6
  %s9 = scalar_select 0, %s8, %s6
  // Predicated region
  $region2: #{patch_embed_stage1.6} parent=0 // pred_check
    _
  $region3: #{patch_embed_stage1.6} parent=0 // pred_check_branch
    %11 = sbr.rel (0) target = $region5
  $region4: #{patch_embed_stage1.6} parent=0 // pred_region
    _
  $region5: #{patch_embed_stage1.6} parent=0 // pred_fallthru
    _
  // Predicated region
  $region6: #{patch_embed_stage1.6} parent=0 // pred_check
    _
  $region7: #{patch_embed_stage1.6} parent=0 // pred_check_branch
    %13 = sbr.rel (0) target = $region9
  $region8: #{patch_embed_stage1.6} parent=0 // pred_region
    _
  $region9: #{patch_embed_stage1.6} parent=0 // pred_fallthru
    _
  %v15 = vld [vmem:[%s0] sm:$0xf]
  %v16 = vld [vmem:[%s0 + $0x4] sm:$0xf]
  %v17 = vld [vmem:[%s0 + $0x8] sm:$0xf]
  %v18 = vld [vmem:[%s0 + $0xc] sm:$0xf]
  %v19 = vld [vmem:[%s1] sm:$0xf]
  %v20 = vld [vmem:[%s1 + $0x4] sm:$0xf]
  %v21 = vld [vmem:[%s1 + $0x8] sm:$0xf]
  %v22 = vld [vmem:[%s1 + $0xc] sm:$0xf]
  %v23 = vld [vmem:[%s1 + $0x10] sm:$0xf]
  %v24 = vld [vmem:[%s1 + $0x14] sm:$0xf]
  %v25 = vld [vmem:[%s1 + $0x18] sm:$0xf]
  %v26 = vld [vmem:[%s1 + $0x1c] sm:$0xf]
  %v27 = vld [vmem:[%s1 + $0x20] sm:$0xf]
  %v28 = vld [vmem:[%s1 + $0x24] sm:$0xf]
  %v29 = vld [vmem:[%s1 + $0x28] sm:$0x1]
  %v34 = vunpack.c.l.b16 %v15
  %v35 = vunpack.c.l.b16 %v16
  %v36 = vunpack.c.l.b16 %v17
  %v37 = vunpack.c.l.b16 %v18
  %v38 = vpack.c.b16 %v35, %v34
  %v39 = vpack.c.b16 %v37, %v36
  %v51 = vunpack.c.l.b16 %v19
  %v52 = vunpack.c.l.b16 %v20
  %v53 = vunpack.c.l.b16 %v21
  %v54 = vunpack.c.l.b16 %v22
  %v55 = vunpack.c.l.b16 %v23
  %v56 = vunpack.c.l.b16 %v24
  %v57 = vunpack.c.l.b16 %v25
  %v58 = vunpack.c.l.b16 %v26
  %v59 = vunpack.c.l.b16 %v27
  %v60 = vunpack.c.l.b16 %v28
  %v61 = vunpack.c.l.b16 %v29
  %v62 = vpack.c.b16 %v52, %v51
  %v63 = vpack.c.b16 %v54, %v53
  %v64 = vpack.c.b16 %v56, %v55
  %v65 = vpack.c.b16 %v58, %v57
  %v66 = vpack.c.b16 %v60, %v59
  %v67 = vpack.c.b16 %v61, %v61
  %vm73 = vcmask 662528
  %v75 = vsel %vm73, %v38, 0
  %v78 = vsel %vm73, %v39, 0
  %vm80 = vcmask 1040384
  %v81 = vsel 0, 4294967295, 65535
  %v82 = vsel %vm80, %v81, 0
  %v84 = vand.u32 %v67, %v82
  %86 = vmatprep.subr.bf16.mxu0 0
  %87 = vmatpush1.bf16.msra.mxu0 0
  %88 = vmatprep.subr.bf16.mxu0 0
  %89 = vmatpush1.bf16.msra.mxu0 0
  %90 = vmatprep.subr.bf16.mxu0 0
  %91 = vmatpush1.bf16.msra.mxu0 %v84
  %92 = vmatprep.subr.bf16.mxu0 0
  %93 = vmatpush1.bf16.msra.mxu0 %v66
  %94 = vmatprep.subr.bf16.mxu0 0
  %95 = vmatpush1.bf16.msra.mxu0 %v65
  %96 = vmatprep.subr.bf16.mxu0 0
  %97 = vmatpush1.bf16.msra.mxu0 %v64
  %98 = vmatprep.subr.bf16.mxu0 0
  %99 = vmatpush1.bf16.msra.mxu0 %v63
  %100 = vmatprep.subr.bf16.mxu0 0
  %101 = vmatpush1.bf16.msra.mxu0 %v62
  %102 = vmatprep.subr.bf16.mxu0 0
  %103 = vmatpush2.bf16.msra.mxu0 0
  %104 = vmatprep.subr.bf16.mxu0 0
  %105 = vmatpush2.bf16.msra.mxu0 0
  %106 = vmatprep.subr.bf16.mxu0 0
  %107 = vmatpush2.bf16.msra.mxu0 0
  %108 = vmatprep.subr.bf16.mxu0 0
  %109 = vmatpush2.bf16.msra.mxu0 0
  %110 = vmatprep.subr.bf16.mxu0 0
  %111 = vmatpush2.bf16.msra.mxu0 0
  %112 = vmatprep.subr.bf16.mxu0 0
  %113 = vmatpush2.bf16.msra.mxu0 0
  %114 = vmatprep.subr.bf16.mxu0 0
  %115 = vmatpush2.bf16.msra.mxu0 0
  %116 = vmatprep.subr.bf16.mxu0 0
  %117 = vmatpush2.bf16.msra.mxu0 0
  %118 = vmatprep.mubr.bf16.mxu0 0
  %119 = vmatmul.mubr.bf16.gmra.mxu0 %v75
  %v120 = vpop.f32.mrf.mxu0
  %v121 = vadd.f32 0.0, %v120
  %v122 = vpop.f32.mrf.mxu0
  %v123 = vpop.f32.mrf.mxu0
  %v124 = vadd.f32 0.0, %v123
  %v125 = vpop.f32.mrf.mxu0
  %126 = vmatprep.mubr.bf16.mxu0 0
  %127 = vmatmul.mubr.bf16.gmra.mxu0 %v78
  %v128 = vpop.f32.mrf.mxu0
  %v129 = vadd.f32 0.0, %v128
  %v130 = vpop.f32.mrf.mxu0
  %v131 = vpop.f32.mrf.mxu0
  %v132 = vadd.f32 0.0, %v131
  %v133 = vpop.f32.mrf.mxu0
  %134 = vdwg.mxu0
  %135 = vst [vmem:[%s2] sm:$0xff] %v121
  %136 = vst [vmem:[%s2 + $0x8] sm:$0xff] %v124
  %137 = vst [vmem:[%s2 + $0x10] sm:$0xff] %v129
  %138 = vst [vmem:[%s2 + $0x18] sm:$0xff] %v132
  %v139 = vadd.f32 %v121, %v124
  %v140 = vadd.f32 %v139, %v129
  %v141 = vadd.f32 %v140, %v132
  %v142 = vrot.slane %v141, 4
  %v143 = vadd.f32 %v141, %v142
  %v144 = vrot.slane %v143, 2
  %v145 = vadd.f32 %v143, %v144
  %v146 = vrot.slane %v145, 1
  %v147 = vadd.f32 %v145, %v146
  %148 = vst [vmem:[%s3] sm:$0x1] %v147
  %v149 = vmul.f32 %v121, %v121
  %v150 = vmul.f32 %v124, %v124
  %v151 = vmul.f32 %v129, %v129
  %v152 = vmul.f32 %v132, %v132
  %v153 = vadd.f32 %v149, %v150
  %v154 = vadd.f32 %v153, %v151
  %v155 = vadd.f32 %v154, %v152
  %v156 = vrot.slane %v155, 4
  %v157 = vadd.f32 %v155, %v156
  %v158 = vrot.slane %v157, 2
  %v159 = vadd.f32 %v157, %v158
  %v160 = vrot.slane %v159, 1
  %v161 = vadd.f32 %v159, %v160
  %162 = vst [vmem:[%s4] sm:$0x1] %v161
  // Predicated region
  $region10: #{patch_embed_stage1.6} parent=0 // pred_check
    _
  $region11: #{patch_embed_stage1.6} parent=0 // pred_check_branch
    %164 = sbr.rel (0) target = $region13
  $region12: #{patch_embed_stage1.6} parent=0 // pred_region
    _
  $region13: #{patch_embed_stage1.6} parent=0 // pred_fallthru
    _
  // Predicated region
  $region14: #{patch_embed_stage1.6} parent=0 // pred_check
    _
  $region15: #{patch_embed_stage1.6} parent=0 // pred_check_branch
    %166 = sbr.rel (0) target = $region17
  $region16: #{patch_embed_stage1.6} parent=0 // pred_region
    _
  $region17: #{patch_embed_stage1.6} parent=0 // pred_fallthru
    _
  // Predicated region
  $region18: #{patch_embed_stage1.6} parent=0 // pred_check
    _
  $region19: #{patch_embed_stage1.6} parent=0 // pred_check_branch
    %168 = sbr.rel (0) target = $region21
  $region20: #{patch_embed_stage1.6} parent=0 // pred_region
    _
  $region21: #{patch_embed_stage1.6} parent=0 // pred_fallthru
    _
  // Predicated region
  $region22: #{patch_embed_stage1.6} parent=0 // pred_check
    _
  $region23: #{patch_embed_stage1.6} parent=0 // pred_check_branch
    %170 = sbr.rel (0) target = $region25
  $region24: #{patch_embed_stage1.6} parent=0 // pred_region
    _
  $region25: #{patch_embed_stage1.6} parent=0 // pred_fallthru
    _
  // Predicated region
  $region26: #{patch_embed_stage1.6} parent=0 // pred_check
    _
  $region27: #{patch_embed_stage1.6} parent=0 // pred_check_branch
    %172 = sbr.rel (0) target = $region29
  $region28: #{patch_embed_stage1.6} parent=0 // pred_region
    _
  $region29: #{patch_embed_stage1.6} parent=0 // pred_fallthru
    _
  // Predicated region
  $region30: #{patch_embed_stage1.6} parent=0 // pred_check
    _
  $region31: #{patch_embed_stage1.6} parent=0 // pred_check_branch
    %174 = sbr.rel (0) target = $region33
  $region32: #{patch_embed_stage1.6} parent=0 // pred_region
    _
  $region33: #{patch_embed_stage1.6} parent=0 // pred_fallthru
    _

// kernel: patch_embed_stage1.8
$region0: #{patch_embed_stage1.8}
  #allocation0 [shape = 'u32[]', space=smem, size = 0x4, offset = 0x4, fixed_abs, tag = 'smem constant byte address 0x4 - core index']
  #allocation1 [shape = 'u32[144,128]{1,0:T(1,128)}', space=vmem, size = 0x12000, scoped, tag = 'internal scratch']
  %s0 = inlined_call_operand.vmem [shape: bf16[32,576], index: 0, kind: input, shape index: {}]
  %s1 = inlined_call_operand.vmem [shape: bf16[576,128], index: 1, kind: input, shape index: {}]
  %s2 = inlined_call_operand.vmem [shape: f32[32,128], index: 2, kind: output, shape index: {0}]
  %s3 = inlined_call_operand.vmem [shape: f32[1,1,128], index: 3, kind: output, shape index: {1}]
  %s4 = inlined_call_operand.vmem [shape: f32[1,1,128], index: 4, kind: output, shape index: {2}]
  %5 = xla_tuple %s2, %s3, %s4
  %s6 = sld [smem:[#allocation0]]
  $region34: #{patch_embed_stage1.8} parent=0
    _
  %s8 = ssub.s32 1, %s6
  %s9 = scalar_select 0, %s8, %s6
  // Predicated region
  $region2: #{patch_embed_stage1.8} parent=0 // pred_check
    _
  $region3: #{patch_embed_stage1.8} parent=0 // pred_check_branch
    %11 = sbr.rel (0) target = $region5
  $region4: #{patch_embed_stage1.8} parent=0 // pred_region
    _
  $region5: #{patch_embed_stage1.8} parent=0 // pred_fallthru
    _
  // Predicated region
  $region6: #{patch_embed_stage1.8} parent=0 // pred_check
    _
  $region7: #{patch_embed_stage1.8} parent=0 // pred_check_branch
    %13 = sbr.rel (0) target = $region9
  $region8: #{patch_embed_stage1.8} parent=0 // pred_region
    _
  $region9: #{patch_embed_stage1.8} parent=0 // pred_fallthru
    _
  %v15 = vld [vmem:[%s0] sm:$0xff]
  %v16 = vld [vmem:[%s0 + $0x8] sm:$0xff]
  %v17 = vld [vmem:[%s0 + $0x10] sm:$0xf]
  %v18 = vld [vmem:[%s0 + $0x14] sm:$0xff]
  %v19 = vld [vmem:[%s0 + $0x1c] sm:$0xff]
  %v20 = vld [vmem:[%s0 + $0x24] sm:$0xf]
  %v21 = vld [vmem:[%s0 + $0x28] sm:$0xff]
  %v22 = vld [vmem:[%s0 + $0x30] sm:$0xff]
  %v23 = vld [vmem:[%s0 + $0x38] sm:$0xf]
  %v24 = vld [vmem:[%s0 + $0x3c] sm:$0xff]
  %v25 = vld [vmem:[%s0 + $0x44] sm:$0xff]
  %v26 = vld [vmem:[%s0 + $0x4c] sm:$0xf]
  %v27 = vld [vmem:[%s1] sm:$0xf]
  %v28 = vld [vmem:[%s1 + $0x4] sm:$0xf]
  %v29 = vld [vmem:[%s1 + $0x8] sm:$0xf]
  %v30 = vld [vmem:[%s1 + $0xc] sm:$0xf]
  %v31 = vld [vmem:[%s1 + $0x10] sm:$0xf]
  %v32 = vld [vmem:[%s1 + $0x14] sm:$0xf]
  %v33 = vld [vmem:[%s1 + $0x18] sm:$0xf]
  %v34 = vld [vmem:[%s1 + $0x1c] sm:$0xf]
  %v35 = vld [vmem:[%s1 + $0x20] sm:$0xf]
  %v36 = vld [vmem:[%s1 + $0x24] sm:$0xf]
  %v37 = vld [vmem:[%s1 + $0x28] sm:$0xf]
  %v38 = vld [vmem:[%s1 + $0x2c] sm:$0xf]
  %v39 = vld [vmem:[%s1 + $0x30] sm:$0xf]
  %v40 = vld [vmem:[%s1 + $0x34] sm:$0xf]
  %v41 = vld [vmem:[%s1 + $0x38] sm:$0xf]
  %v42 = vld [vmem:[%s1 + $0x3c] sm:$0xf]
  %v43 = vld [vmem:[%s1 + $0x40] sm:$0xf]
  %v44 = vld [vmem:[%s1 + $0x44] sm:$0xf]
  %v45 = vld [vmem:[%s1 + $0x48] sm:$0xf]
  %v46 = vld [vmem:[%s1 + $0x4c] sm:$0xf]
  %v47 = vld [vmem:[%s1 + $0x50] sm:$0xf]
  %v48 = vld [vmem:[%s1 + $0x54] sm:$0xf]
  %v49 = vld [vmem:[%s1 + $0x58] sm:$0xf]
  %v50 = vld [vmem:[%s1 + $0x5c] sm:$0xf]
  %v51 = vld [vmem:[%s1 + $0x60] sm:$0xf]
  %v52 = vld [vmem:[%s1 + $0x64] sm:$0xf]
  %v53 = vld [vmem:[%s1 + $0x68] sm:$0xf]
  %v54 = vld [vmem:[%s1 + $0x6c] sm:$0xf]
  %v55 = vld [vmem:[%s1 + $0x70] sm:$0xf]
  %v56 = vld [vmem:[%s1 + $0x74] sm:$0xf]
  %v57 = vld [vmem:[%s1 + $0x78] sm:$0xf]
  %v58 = vld [vmem:[%s1 + $0x7c] sm:$0xf]
  %v59 = vld [vmem:[%s1 + $0x80] sm:$0xf]
  %v60 = vld [vmem:[%s1 + $0x84] sm:$0xf]
  %v61 = vld [vmem:[%s1 + $0x88] sm:$0xf]
  %v62 = vld [vmem:[%s1 + $0x8c] sm:$0xf]
  %v63 = vld [vmem:[%s1 + $0x90] sm:$0xf]
  %v64 = vld [vmem:[%s1 + $0x94] sm:$0xf]
  %v65 = vld [vmem:[%s1 + $0x98] sm:$0xf]
  %v66 = vld [vmem:[%s1 + $0x9c] sm:$0xf]
  %v67 = vld [vmem:[%s1 + $0xa0] sm:$0xf]
  %v68 = vld [vmem:[%s1 + $0xa4] sm:$0xf]
  %v69 = vld [vmem:[%s1 + $0xa8] sm:$0xf]
  %v70 = vld [vmem:[%s1 + $0xac] sm:$0xf]
  %v71 = vld [vmem:[%s1 + $0xb0] sm:$0xf]
  %v72 = vld [vmem:[%s1 + $0xb4] sm:$0xf]
  %v73 = vld [vmem:[%s1 + $0xb8] sm:$0xf]
  %v74 = vld [vmem:[%s1 + $0xbc] sm:$0xf]
  %v75 = vld [vmem:[%s1 + $0xc0] sm:$0xf]
  %v76 = vld [vmem:[%s1 + $0xc4] sm:$0xf]
  %v77 = vld [vmem:[%s1 + $0xc8] sm:$0xf]
  %v78 = vld [vmem:[%s1 + $0xcc] sm:$0xf]
  %v79 = vld [vmem:[%s1 + $0xd0] sm:$0xf]
  %v80 = vld [vmem:[%s1 + $0xd4] sm:$0xf]
  %v81 = vld [vmem:[%s1 + $0xd8] sm:$0xf]
  %v82 = vld [vmem:[%s1 + $0xdc] sm:$0xf]
  %v83 = vld [vmem:[%s1 + $0xe0] sm:$0xf]
  %v84 = vld [vmem:[%s1 + $0xe4] sm:$0xf]
  %v85 = vld [vmem:[%s1 + $0xe8] sm:$0xf]
  %v86 = vld [vmem:[%s1 + $0xec] sm:$0xf]
  %v87 = vld [vmem:[%s1 + $0xf0] sm:$0xf]
  %v88 = vld [vmem:[%s1 + $0xf4] sm:$0xf]
  %v89 = vld [vmem:[%s1 + $0xf8] sm:$0xf]
  %v90 = vld [vmem:[%s1 + $0xfc] sm:$0xf]
  %v91 = vld [vmem:[%s1 + $0x100] sm:$0xf]
  %v92 = vld [vmem:[%s1 + $0x104] sm:$0xf]
  %v93 = vld [vmem:[%s1 + $0x108] sm:$0xf]
  %v94 = vld [vmem:[%s1 + $0x10c] sm:$0xf]
  %v95 = vld [vmem:[%s1 + $0x110] sm:$0xf]
  %v96 = vld [vmem:[%s1 + $0x114] sm:$0xf]
  %v97 = vld [vmem:[%s1 + $0x118] sm:$0xf]
  %v98 = vld [vmem:[%s1 + $0x11c] sm:$0xf]
  %v111 = vunpack.c.l.b16 %v15
  %v112 = vunpack.c.h.b16 %v15
  %v113 = vunpack.c.l.b16 %v16
  %v114 = vunpack.c.h.b16 %v16
  %v115 = vunpack.c.l.b16 %v17
  %v116 = vunpack.c.l.b16 %v18
  %v117 = vunpack.c.h.b16 %v18
  %v118 = vunpack.c.l.b16 %v19
  %v119 = vunpack.c.h.b16 %v19
  %v120 = vunpack.c.l.b16 %v20
  %v121 = vunpack.c.l.b16 %v21
  %v122 = vunpack.c.h.b16 %v21
  %v123 = vunpack.c.l.b16 %v22
  %v124 = vunpack.c.h.b16 %v22
  %v125 = vunpack.c.l.b16 %v23
  %v126 = vunpack.c.l.b16 %v24
  %v127 = vunpack.c.h.b16 %v24
  %v128 = vunpack.c.l.b16 %v25
  %v129 = vunpack.c.h.b16 %v25
  %v130 = vunpack.c.l.b16 %v26
  %v131 = vpack.c.b16 %v116, %v111
  %v132 = vpack.c.b16 %v117, %v112
  %v133 = vpack.c.b16 %v118, %v113
  %v134 = vpack.c.b16 %v119, %v114
  %v135 = vpack.c.b16 %v120, %v115
  %v136 = vpack.c.b16 %v126, %v121
  %v137 = vpack.c.b16 %v127, %v122
  %v138 = vpack.c.b16 %v128, %v123
  %v139 = vpack.c.b16 %v129, %v124
  %v140 = vpack.c.b16 %v130, %v125
  %v221 = vunpack.c.l.b16 %v27
  %v222 = vunpack.c.l.b16 %v28
  %v223 = vunpack.c.l.b16 %v29
  %v224 = vunpack.c.l.b16 %v30
  %v225 = vunpack.c.l.b16 %v31
  %v226 = vunpack.c.l.b16 %v32
  %v227 = vunpack.c.l.b16 %v33
  %v228 = vunpack.c.l.b16 %v34
  %v229 = vunpack.c.l.b16 %v35
  %v230 = vunpack.c.l.b16 %v36
  %v231 = vunpack.c.l.b16 %v37
  %v232 = vunpack.c.l.b16 %v38
  %v233 = vunpack.c.l.b16 %v39
  %v234 = vunpack.c.l.b16 %v40
  %v235 = vunpack.c.l.b16 %v41
  %v236 = vunpack.c.l.b16 %v42
  %v237 = vunpack.c.l.b16 %v43
  %v238 = vunpack.c.l.b16 %v44
  %v239 = vunpack.c.l.b16 %v45
  %v240 = vunpack.c.l.b16 %v46
  %v241 = vunpack.c.l.b16 %v47
  %v242 = vunpack.c.l.b16 %v48
  %v243 = vunpack.c.l.b16 %v49
  %v244 = vunpack.c.l.b16 %v50
  %v245 = vunpack.c.l.b16 %v51
  %v246 = vunpack.c.l.b16 %v52
  %v247 = vunpack.c.l.b16 %v53
  %v248 = vunpack.c.l.b16 %v54
  %v249 = vunpack.c.l.b16 %v55
  %v250 = vunpack.c.l.b16 %v56
  %v251 = vunpack.c.l.b16 %v57
  %v252 = vunpack.c.l.b16 %v58
  %v253 = vunpack.c.l.b16 %v59
  %v254 = vunpack.c.l.b16 %v60
  %v255 = vunpack.c.l.b16 %v61
  %v256 = vunpack.c.l.b16 %v62
  %v257 = vunpack.c.l.b16 %v63
  %v258 = vunpack.c.l.b16 %v64
  %v259 = vunpack.c.l.b16 %v65
  %v260 = vunpack.c.l.b16 %v66
  %v261 = vunpack.c.l.b16 %v67
  %v262 = vunpack.c.l.b16 %v68
  %v263 = vunpack.c.l.b16 %v69
  %v264 = vunpack.c.l.b16 %v70
  %v265 = vunpack.c.l.b16 %v71
  %v266 = vunpack.c.l.b16 %v72
  %v267 = vunpack.c.l.b16 %v73
  %v268 = vunpack.c.l.b16 %v74
  %v269 = vunpack.c.l.b16 %v75
  %v270 = vunpack.c.l.b16 %v76
  %v271 = vunpack.c.l.b16 %v77
  %v272 = vunpack.c.l.b16 %v78
  %v273 = vunpack.c.l.b16 %v79
  %v274 = vunpack.c.l.b16 %v80
  %v275 = vunpack.c.l.b16 %v81
  %v276 = vunpack.c.l.b16 %v82
  %v277 = vunpack.c.l.b16 %v83
  %v278 = vunpack.c.l.b16 %v84
  %v279 = vunpack.c.l.b16 %v85
  %v280 = vunpack.c.l.b16 %v86
  %v281 = vunpack.c.l.b16 %v87
  %v282 = vunpack.c.l.b16 %v88
  %v283 = vunpack.c.l.b16 %v89
  %v284 = vunpack.c.l.b16 %v90
  %v285 = vunpack.c.l.b16 %v91
  %v286 = vunpack.c.l.b16 %v92
  %v287 = vunpack.c.l.b16 %v93
  %v288 = vunpack.c.l.b16 %v94
  %v289 = vunpack.c.l.b16 %v95
  %v290 = vunpack.c.l.b16 %v96
  %v291 = vunpack.c.l.b16 %v97
  %v292 = vunpack.c.l.b16 %v98
  %v293 = vpack.c.b16 %v222, %v221
  %v294 = vpack.c.b16 %v224, %v223
  %v295 = vpack.c.b16 %v226, %v225
  %v296 = vpack.c.b16 %v228, %v227
  %v297 = vpack.c.b16 %v230, %v229
  %v298 = vpack.c.b16 %v232, %v231
  %v299 = vpack.c.b16 %v234, %v233
  %v300 = vpack.c.b16 %v236, %v235
  %v301 = vpack.c.b16 %v238, %v237
  %v302 = vpack.c.b16 %v240, %v239
  %v303 = vpack.c.b16 %v242, %v241
  %v304 = vpack.c.b16 %v244, %v243
  %v305 = vpack.c.b16 %v246, %v245
  %v306 = vpack.c.b16 %v248, %v247
  %v307 = vpack.c.b16 %v250, %v249
  %v308 = vpack.c.b16 %v252, %v251
  %v309 = vpack.c.b16 %v254, %v253
  %v310 = vpack.c.b16 %v256, %v255
  %v311 = vpack.c.b16 %v258, %v257
  %v312 = vpack.c.b16 %v260, %v259
  %v313 = vpack.c.b16 %v262, %v261
  %v314 = vpack.c.b16 %v264, %v263
  %v315 = vpack.c.b16 %v266, %v265
  %v316 = vpack.c.b16 %v268, %v267
  %v317 = vpack.c.b16 %v270, %v269
  %v318 = vpack.c.b16 %v272, %v271
  %v319 = vpack.c.b16 %v274, %v273
  %v320 = vpack.c.b16 %v276, %v275
  %v321 = vpack.c.b16 %v278, %v277
  %v322 = vpack.c.b16 %v280, %v279
  %v323 = vpack.c.b16 %v282, %v281
  %v324 = vpack.c.b16 %v284, %v283
  %v325 = vpack.c.b16 %v286, %v285
  %v326 = vpack.c.b16 %v288, %v287
  %v327 = vpack.c.b16 %v290, %v289
  %v328 = vpack.c.b16 %v292, %v291
  %vm365 = vcmask 523264
  %v367 = vsel %vm365, %v135, 0
  %v370 = vsel %vm365, %v140, 0
  %372 = vmatprep.subr.bf16.mxu0 0
  %373 = vmatpush1.bf16.msra.mxu0 %v300
  %374 = vmatprep.subr.bf16.mxu0 0
  %375 = vmatpush1.bf16.msra.mxu0 %v299
  %376 = vmatprep.subr.bf16.mxu0 0
  %377 = vmatpush1.bf16.msra.mxu0 %v298
  %378 = vmatprep.subr.bf16.mxu0 0
  %379 = vmatpush1.bf16.msra.mxu0 %v297
  %380 = vmatprep.subr.bf16.mxu0 0
  %381 = vmatpush1.bf16.msra.mxu0 %v296
  %382 = vmatprep.subr.bf16.mxu0 0
  %383 = vmatpush1.bf16.msra.mxu0 %v295
  %384 = vmatprep.subr.bf16.mxu0 0
  %385 = vmatpush1.bf16.msra.mxu0 %v294
  %386 = vmatprep.subr.bf16.mxu0 0
  %387 = vmatpush1.bf16.msra.mxu0 %v293
  %388 = vmatprep.subr.bf16.mxu0 0
  %389 = vmatpush2.bf16.msra.mxu0 %v308
  %390 = vmatprep.subr.bf16.mxu0 0
  %391 = vmatpush2.bf16.msra.mxu0 %v307
  %392 = vmatprep.subr.bf16.mxu0 0
  %393 = vmatpush2.bf16.msra.mxu0 %v306
  %394 = vmatprep.subr.bf16.mxu0 0
  %395 = vmatpush2.bf16.msra.mxu0 %v305
  %396 = vmatprep.subr.bf16.mxu0 0
  %397 = vmatpush2.bf16.msra.mxu0 %v304
  %398 = vmatprep.subr.bf16.mxu0 0
  %399 = vmatpush2.bf16.msra.mxu0 %v303
  %400 = vmatprep.subr.bf16.mxu0 0
  %401 = vmatpush2.bf16.msra.mxu0 %v302
  %402 = vmatprep.subr.bf16.mxu0 0
  %403 = vmatpush2.bf16.msra.mxu0 %v301
  %404 = vmatprep.mubr.bf16.mxu0 %v132
  %405 = vmatmul.mubr.bf16.gmra.mxu0 %v131
  %v406 = vpop.f32.mrf.mxu0
  %v407 = vadd.f32 0.0, %v406
  %v408 = vpop.f32.mrf.mxu0
  %v409 = vpop.f32.mrf.mxu0
  %v410 = vadd.f32 0.0, %v409
  %v411 = vpop.f32.mrf.mxu0
  %412 = vmatprep.mubr.bf16.mxu0 %v137
  %413 = vmatmul.mubr.bf16.gmra.mxu0 %v136
  %v414 = vpop.f32.mrf.mxu0
  %v415 = vadd.f32 0.0, %v414
  %v416 = vpop.f32.mrf.mxu0
  %v417 = vpop.f32.mrf.mxu0
  %v418 = vadd.f32 0.0, %v417
  %v419 = vpop.f32.mrf.mxu0
  %420 = vdwg.mxu0
  %421 = vmatprep.subr.bf16.mxu0 0
  %422 = vmatpush1.bf16.msra.mxu0 %v316
  %423 = vmatprep.subr.bf16.mxu0 0
  %424 = vmatpush1.bf16.msra.mxu0 %v315
  %425 = vmatprep.subr.bf16.mxu0 0
  %426 = vmatpush1.bf16.msra.mxu0 %v314
  %427 = vmatprep.subr.bf16.mxu0 0
  %428 = vmatpush1.bf16.msra.mxu0 %v313
  %429 = vmatprep.subr.bf16.mxu0 0
  %430 = vmatpush1.bf16.msra.mxu0 %v312
  %431 = vmatprep.subr.bf16.mxu0 0
  %432 = vmatpush1.bf16.msra.mxu0 %v311
  %433 = vmatprep.subr.bf16.mxu0 0
  %434 = vmatpush1.bf16.msra.mxu0 %v310
  %435 = vmatprep.subr.bf16.mxu0 0
  %436 = vmatpush1.bf16.msra.mxu0 %v309
  %437 = vmatprep.subr.bf16.mxu0 0
  %438 = vmatpush2.bf16.msra.mxu0 %v324
  %439 = vmatprep.subr.bf16.mxu0 0
  %440 = vmatpush2.bf16.msra.mxu0 %v323
  %441 = vmatprep.subr.bf16.mxu0 0
  %442 = vmatpush2.bf16.msra.mxu0 %v322
  %443 = vmatprep.subr.bf16.mxu0 0
  %444 = vmatpush2.bf16.msra.mxu0 %v321
  %445 = vmatprep.subr.bf16.mxu0 0
  %446 = vmatpush2.bf16.msra.mxu0 %v320
  %447 = vmatprep.subr.bf16.mxu0 0
  %448 = vmatpush2.bf16.msra.mxu0 %v319
  %449 = vmatprep.subr.bf16.mxu0 0
  %450 = vmatpush2.bf16.msra.mxu0 %v318
  %451 = vmatprep.subr.bf16.mxu0 0
  %452 = vmatpush2.bf16.msra.mxu0 %v317
  %453 = vmatprep.mubr.bf16.mxu0 %v134
  %454 = vmatmul.mubr.bf16.gmra.mxu0 %v133
  %v455 = vpop.f32.mrf.mxu0
  %v456 = vadd.f32 %v407, %v455
  %v457 = vpop.f32.mrf.mxu0
  %v458 = vpop.f32.mrf.mxu0
  %v459 = vadd.f32 %v410, %v458
  %v460 = vpop.f32.mrf.mxu0
  %461 = vmatprep.mubr.bf16.mxu0 %v139
  %462 = vmatmul.mubr.bf16.gmra.mxu0 %v138
  %v463 = vpop.f32.mrf.mxu0
  %v464 = vadd.f32 %v415, %v463
  %v465 = vpop.f32.mrf.mxu0
  %v466 = vpop.f32.mrf.mxu0
  %v467 = vadd.f32 %v418, %v466
  %v468 = vpop.f32.mrf.mxu0
  %469 = vdwg.mxu0
  %470 = vmatprep.subr.bf16.mxu0 0
  %471 = vmatpush1.bf16.msra.mxu0 0
  %472 = vmatprep.subr.bf16.mxu0 0
  %473 = vmatpush1.bf16.msra.mxu0 0
  %474 = vmatprep.subr.bf16.mxu0 0
  %475 = vmatpush1.bf16.msra.mxu0 0
  %476 = vmatprep.subr.bf16.mxu0 0
  %477 = vmatpush1.bf16.msra.mxu0 0
  %478 = vmatprep.subr.bf16.mxu0 0
  %479 = vmatpush1.bf16.msra.mxu0 %v328
  %480 = vmatprep.subr.bf16.mxu0 0
  %481 = vmatpush1.bf16.msra.mxu0 %v327
  %482 = vmatprep.subr.bf16.mxu0 0
  %483 = vmatpush1.bf16.msra.mxu0 %v326
  %484 = vmatprep.subr.bf16.mxu0 0
  %485 = vmatpush1.bf16.msra.mxu0 %v325
  %486 = vmatprep.subr.bf16.mxu0 0
  %487 = vmatpush2.bf16.msra.mxu0 0
  %488 = vmatprep.subr.bf16.mxu0 0
  %489 = vmatpush2.bf16.msra.mxu0 0
  %490 = vmatprep.subr.bf16.mxu0 0
  %491 = vmatpush2.bf16.msra.mxu0 0
  %492 = vmatprep.subr.bf16.mxu0 0
  %493 = vmatpush2.bf16.msra.mxu0 0
  %494 = vmatprep.subr.bf16.mxu0 0
  %495 = vmatpush2.bf16.msra.mxu0 0
  %496 = vmatprep.subr.bf16.mxu0 0
  %497 = vmatpush2.bf16.msra.mxu0 0
  %498 = vmatprep.subr.bf16.mxu0 0
  %499 = vmatpush2.bf16.msra.mxu0 0
  %500 = vmatprep.subr.bf16.mxu0 0
  %501 = vmatpush2.bf16.msra.mxu0 0
  %502 = vmatprep.mubr.bf16.mxu0 0
  %503 = vmatmul.mubr.bf16.gmra.mxu0 %v367
  %v504 = vpop.f32.mrf.mxu0
  %v505 = vadd.f32 %v456, %v504
  %v506 = vpop.f32.mrf.mxu0
  %v507 = vpop.f32.mrf.mxu0
  %v508 = vadd.f32 %v459, %v507
  %v509 = vpop.f32.mrf.mxu0
  %510 = vmatprep.mubr.bf16.mxu0 0
  %511 = vmatmul.mubr.bf16.gmra.mxu0 %v370
  %v512 = vpop.f32.mrf.mxu0
  %v513 = vadd.f32 %v464, %v512
  %v514 = vpop.f32.mrf.mxu0
  %v515 = vpop.f32.mrf.mxu0
  %v516 = vadd.f32 %v467, %v515
  %v517 = vpop.f32.mrf.mxu0
  %518 = vdwg.mxu0
  %519 = vst [vmem:[%s2] sm:$0xff] %v505
  %520 = vst [vmem:[%s2 + $0x8] sm:$0xff] %v508
  %521 = vst [vmem:[%s2 + $0x10] sm:$0xff] %v513
  %522 = vst [vmem:[%s2 + $0x18] sm:$0xff] %v516
  %v523 = vadd.f32 %v505, %v508
  %v524 = vadd.f32 %v523, %v513
  %v525 = vadd.f32 %v524, %v516
  %v526 = vrot.slane %v525, 4
  %v527 = vadd.f32 %v525, %v526
  %v528 = vrot.slane %v527, 2
  %v529 = vadd.f32 %v527, %v528
  %v530 = vrot.slane %v529, 1
  %v531 = vadd.f32 %v529, %v530
  %532 = vst [vmem:[%s3] sm:$0x1] %v531
  %v533 = vmul.f32 %v505, %v505
  %v534 = vmul.f32 %v508, %v508
  %v535 = vmul.f32 %v513, %v513
  %v536 = vmul.f32 %v516, %v516
  %v537 = vadd.f32 %v533, %v534
  %v538 = vadd.f32 %v537, %v535
  %v539 = vadd.f32 %v538, %v536
  %v540 = vrot.slane %v539, 4
  %v541 = vadd.f32 %v539, %v540
  %v542 = vrot.slane %v541, 2
  %v543 = vadd.f32 %v541, %v542
  %v544 = vrot.slane %v543, 1
  %v545 = vadd.f32 %v543, %v544
  %546 = vst [vmem:[%s4] sm:$0x1] %v545
  // Predicated region
  $region10: #{patch_embed_stage1.8} parent=0 // pred_check
    _
  $region11: #{patch_embed_stage1.8} parent=0 // pred_check_branch
    %548 = sbr.rel (0) target = $region13
  $region12: #{patch_embed_stage1.8} parent=0 // pred_region
    _
  $region13: #{patch_embed_stage1.8} parent=0 // pred_fallthru
    _
  // Predicated region
  $region14: #{patch_embed_stage1.8} parent=0 // pred_check
    _
  $region15: #{patch_embed_stage1.8} parent=0 // pred_check_branch
    %550 = sbr.rel (0) target = $region17
  $region16: #{patch_embed_stage1.8} parent=0 // pred_region
    _
  $region17: #{patch_embed_stage1.8} parent=0 // pred_fallthru
    _
  // Predicated region
  $region18: #{patch_embed_stage1.8} parent=0 // pred_check
    _
  $region19: #{patch_embed_stage1.8} parent=0 // pred_check_branch
    %552 = sbr.rel (0) target = $region21
  $region20: #{patch_embed_stage1.8} parent=0 // pred_region
    _
  $region21: #{patch_embed_stage1.8} parent=0 // pred_fallthru
    _
  // Predicated region
  $region22: #{patch_embed_stage1.8} parent=0 // pred_check
    _
  $region23: #{patch_embed_stage1.8} parent=0 // pred_check_branch
    %554 = sbr.rel (0) target = $region25
  $region24: #{patch_embed_stage1.8} parent=0 // pred_region
    _
  $region25: #{patch_embed_stage1.8} parent=0 // pred_fallthru
    _
  // Predicated region
  $region26: #{patch_embed_stage1.8} parent=0 // pred_check
    _
  $region27: #{patch_embed_stage1.8} parent=0 // pred_check_branch
    %556 = sbr.rel (0) target = $region29
  $region28: #{patch_embed_stage1.8} parent=0 // pred_region
    _
  $region29: #{patch_embed_stage1.8} parent=0 // pred_fallthru
    _
  // Predicated region
  $region30: #{patch_embed_stage1.8} parent=0 // pred_check
    _
  $region31: #{patch_embed_stage1.8} parent=0 // pred_check_branch
    %558 = sbr.rel (0) target = $region33
  $region32: #{patch_embed_stage1.8} parent=0 // pred_region
    _
  $region33: #{patch_embed_stage1.8} parent=0 // pred_fallthru
    _

// kernel: tile.53
$region0: #{tile.53}
  #allocation0 [shape = 's32[1]{0}', space=sflag, size = 0x4, scoped, tag = 'scoped memory for tile.53']
  %s0 = inlined_call_operand.vmem [shape: f32[64], index: 0, kind: input, shape index: {}]
  %s1 = inlined_call_operand.vmem [shape: f32[2,64], index: 1, kind: output, shape index: {}]
  // Predicated region
  $region2: #{tile.53} parent=0 // pred_check
    _
  $region3: #{tile.53} parent=0 // pred_check_branch
    %3 = sbr.rel (0) target = $region5
  $region4: #{tile.53} parent=0 // pred_region
    _
  $region5: #{tile.53} parent=0 // pred_fallthru
    _
  %v4 = vld [vmem:[%s0] ss:$0 sm:$0xff]
  %5 = vst [vmem:[%s1] sm:$0x3] %v4

// kernel: tile.54
$region0: #{tile.54}
  %s0 = inlined_call_operand.vmem [shape: f32[2,64], index: 0, kind: input, shape index: {}]
  %s1 = inlined_call_operand.vmem [shape: f32[1,128], index: 1, kind: output, shape index: {}]
  $region1: #{tile.54} parent=0
    #allocation0 [shape = 'u8[4096]{0}', space=vmem, size = 0x1000, scoped, tag = 'scoped mem for output reshape']
    #allocation1 [shape = 'u8[4096]{0}', space=vmem, size = 0x1000, scoped, tag = 'scoped mem for input reshape']
    %s3 = sshll.u32 1, 2
    %s4 = ssub.s32 %s3, 1
    %v5 = vld [vmem:[%s0] sm:%s4]
    %6 = vst [vmem:[#allocation1] sm:%s4] %v5
    %v7 = vld [vmem:[#allocation1] sm:$0x1]
    %vm8 = vcmask 523264
    %9 = vst.msk [vmem:[#allocation0] sm:$0x1] %vm8, %v7
    %s10 = scalar_lea.vmem [#allocation1], 1
    %v11 = vld [vmem:[%s10] sm:$0x1]
    %12 = vrot.lane.b32.xlu0 %v11, 64
    %v13 = vpop.permute.xlu0 %12
    %vm14 = vcmask 1048064
    %15 = vst.msk [vmem:[#allocation0] sm:$0x1] %vm14, %v13
    %s17 = sshll.u32 1, 1
    %s18 = ssub.s32 %s17, 1
    %v20 = vld [vmem:[#allocation0] sm:%s18]
    %s21 = sshll.u32 1, 1
    %s22 = ssub.s32 %s21, 1
    %23 = vst [vmem:[%s1] sm:%s22] %v20

// kernel: patch_embed_stage1.10
$region0: #{patch_embed_stage1.10}
  #allocation0 [shape = 'u32[]', space=smem, size = 0x4, offset = 0x4, fixed_abs, tag = 'smem constant byte address 0x4 - core index']
  #allocation1 [shape = 'u32[144,128]{1,0:T(1,128)}', space=vmem, size = 0x12000, scoped, tag = 'internal scratch']
  %s0 = inlined_call_operand.vmem [shape: bf16[16,480], index: 0, kind: input, shape index: {}]
  %s1 = inlined_call_operand.vmem [shape: bf16[480,128], index: 1, kind: input, shape index: {}]
  %s2 = inlined_call_operand.vmem [shape: f32[16,128], index: 2, kind: output, shape index: {0}]
  %s3 = inlined_call_operand.vmem [shape: f32[1,1,128], index: 3, kind: output, shape index: {1}]
  %s4 = inlined_call_operand.vmem [shape: f32[1,1,128], index: 4, kind: output, shape index: {2}]
  %5 = xla_tuple %s2, %s3, %s4
  %s6 = sld [smem:[#allocation0]]
  $region34: #{patch_embed_stage1.10} parent=0
    _
  %s8 = ssub.s32 1, %s6
  %s9 = scalar_select 0, %s8, %s6
  // Predicated region
  $region2: #{patch_embed_stage1.10} parent=0 // pred_check
    _
  $region3: #{patch_embed_stage1.10} parent=0 // pred_check_branch
    %11 = sbr.rel (0) target = $region5
  $region4: #{patch_embed_stage1.10} parent=0 // pred_region
    _
  $region5: #{patch_embed_stage1.10} parent=0 // pred_fallthru
    _
  // Predicated region
  $region6: #{patch_embed_stage1.10} parent=0 // pred_check
    _
  $region7: #{patch_embed_stage1.10} parent=0 // pred_check_branch
    %13 = sbr.rel (0) target = $region9
  $region8: #{patch_embed_stage1.10} parent=0 // pred_region
    _
  $region9: #{patch_embed_stage1.10} parent=0 // pred_fallthru
    _
  %v15 = vld [vmem:[%s0] sm:$0xff]
  %v16 = vld [vmem:[%s0 + $0x8] sm:$0xff]
  %v17 = vld [vmem:[%s0 + $0x10] sm:$0xff]
  %v18 = vld [vmem:[%s0 + $0x18] sm:$0xff]
  %v19 = vld [vmem:[%s1] sm:$0xf]
  %v20 = vld [vmem:[%s1 + $0x4] sm:$0xf]
  %v21 = vld [vmem:[%s1 + $0x8] sm:$0xf]
  %v22 = vld [vmem:[%s1 + $0xc] sm:$0xf]
  %v23 = vld [vmem:[%s1 + $0x10] sm:$0xf]
  %v24 = vld [vmem:[%s1 + $0x14] sm:$0xf]
  %v25 = vld [vmem:[%s1 + $0x18] sm:$0xf]
  %v26 = vld [vmem:[%s1 + $0x1c] sm:$0xf]
  %v27 = vld [vmem:[%s1 + $0x20] sm:$0xf]
  %v28 = vld [vmem:[%s1 + $0x24] sm:$0xf]
  %v29 = vld [vmem:[%s1 + $0x28] sm:$0xf]
  %v30 = vld [vmem:[%s1 + $0x2c] sm:$0xf]
  %v31 = vld [vmem:[%s1 + $0x30] sm:$0xf]
  %v32 = vld [vmem:[%s1 + $0x34] sm:$0xf]
  %v33 = vld [vmem:[%s1 + $0x38] sm:$0xf]
  %v34 = vld [vmem:[%s1 + $0x3c] sm:$0xf]
  %v35 = vld [vmem:[%s1 + $0x40] sm:$0xf]
  %v36 = vld [vmem:[%s1 + $0x44] sm:$0xf]
  %v37 = vld [vmem:[%s1 + $0x48] sm:$0xf]
  %v38 = vld [vmem:[%s1 + $0x4c] sm:$0xf]
  %v39 = vld [vmem:[%s1 + $0x50] sm:$0xf]
  %v40 = vld [vmem:[%s1 + $0x54] sm:$0xf]
  %v41 = vld [vmem:[%s1 + $0x58] sm:$0xf]
  %v42 = vld [vmem:[%s1 + $0x5c] sm:$0xf]
  %v43 = vld [vmem:[%s1 + $0x60] sm:$0xf]
  %v44 = vld [vmem:[%s1 + $0x64] sm:$0xf]
  %v45 = vld [vmem:[%s1 + $0x68] sm:$0xf]
  %v46 = vld [vmem:[%s1 + $0x6c] sm:$0xf]
  %v47 = vld [vmem:[%s1 + $0x70] sm:$0xf]
  %v48 = vld [vmem:[%s1 + $0x74] sm:$0xf]
  %v49 = vld [vmem:[%s1 + $0x78] sm:$0xf]
  %v50 = vld [vmem:[%s1 + $0x7c] sm:$0xf]
  %v51 = vld [vmem:[%s1 + $0x80] sm:$0xf]
  %v52 = vld [vmem:[%s1 + $0x84] sm:$0xf]
  %v53 = vld [vmem:[%s1 + $0x88] sm:$0xf]
  %v54 = vld [vmem:[%s1 + $0x8c] sm:$0xf]
  %v55 = vld [vmem:[%s1 + $0x90] sm:$0xf]
  %v56 = vld [vmem:[%s1 + $0x94] sm:$0xf]
  %v57 = vld [vmem:[%s1 + $0x98] sm:$0xf]
  %v58 = vld [vmem:[%s1 + $0x9c] sm:$0xf]
  %v59 = vld [vmem:[%s1 + $0xa0] sm:$0xf]
  %v60 = vld [vmem:[%s1 + $0xa4] sm:$0xf]
  %v61 = vld [vmem:[%s1 + $0xa8] sm:$0xf]
  %v62 = vld [vmem:[%s1 + $0xac] sm:$0xf]
  %v63 = vld [vmem:[%s1 + $0xb0] sm:$0xf]
  %v64 = vld [vmem:[%s1 + $0xb4] sm:$0xf]
  %v65 = vld [vmem:[%s1 + $0xb8] sm:$0xf]
  %v66 = vld [vmem:[%s1 + $0xbc] sm:$0xf]
  %v67 = vld [vmem:[%s1 + $0xc0] sm:$0xf]
  %v68 = vld [vmem:[%s1 + $0xc4] sm:$0xf]
  %v69 = vld [vmem:[%s1 + $0xc8] sm:$0xf]
  %v70 = vld [vmem:[%s1 + $0xcc] sm:$0xf]
  %v71 = vld [vmem:[%s1 + $0xd0] sm:$0xf]
  %v72 = vld [vmem:[%s1 + $0xd4] sm:$0xf]
  %v73 = vld [vmem:[%s1 + $0xd8] sm:$0xf]
  %v74 = vld [vmem:[%s1 + $0xdc] sm:$0xf]
  %v75 = vld [vmem:[%s1 + $0xe0] sm:$0xf]
  %v76 = vld [vmem:[%s1 + $0xe4] sm:$0xf]
  %v77 = vld [vmem:[%s1 + $0xe8] sm:$0xf]
  %v78 = vld [vmem:[%s1 + $0xec] sm:$0xf]
  %v83 = vunpack.c.l.b16 %v15
  %v84 = vunpack.c.h.b16 %v15
  %v85 = vunpack.c.l.b16 %v16
  %v86 = vunpack.c.h.b16 %v16
  %v87 = vunpack.c.l.b16 %v17
  %v88 = vunpack.c.h.b16 %v17
  %v89 = vunpack.c.l.b16 %v18
  %v90 = vunpack.c.h.b16 %v18
  %v91 = vpack.c.b16 %v87, %v83
  %v92 = vpack.c.b16 %v88, %v84
  %v93 = vpack.c.b16 %v89, %v85
  %v94 = vpack.c.b16 %v90, %v86
  %v158 = vunpack.c.l.b16 %v19
  %v159 = vunpack.c.l.b16 %v20
  %v160 = vunpack.c.l.b16 %v21
  %v161 = vunpack.c.l.b16 %v22
  %v162 = vunpack.c.l.b16 %v23
  %v163 = vunpack.c.l.b16 %v24
  %v164 = vunpack.c.l.b16 %v25
  %v165 = vunpack.c.l.b16 %v26
  %v166 = vunpack.c.l.b16 %v27
  %v167 = vunpack.c.l.b16 %v28
  %v168 = vunpack.c.l.b16 %v29
  %v169 = vunpack.c.l.b16 %v30
  %v170 = vunpack.c.l.b16 %v31
  %v171 = vunpack.c.l.b16 %v32
  %v172 = vunpack.c.l.b16 %v33
  %v173 = vunpack.c.l.b16 %v34
  %v174 = vunpack.c.l.b16 %v35
  %v175 = vunpack.c.l.b16 %v36
  %v176 = vunpack.c.l.b16 %v37
  %v177 = vunpack.c.l.b16 %v38
  %v178 = vunpack.c.l.b16 %v39
  %v179 = vunpack.c.l.b16 %v40
  %v180 = vunpack.c.l.b16 %v41
  %v181 = vunpack.c.l.b16 %v42
  %v182 = vunpack.c.l.b16 %v43
  %v183 = vunpack.c.l.b16 %v44
  %v184 = vunpack.c.l.b16 %v45
  %v185 = vunpack.c.l.b16 %v46
  %v186 = vunpack.c.l.b16 %v47
  %v187 = vunpack.c.l.b16 %v48
  %v188 = vunpack.c.l.b16 %v49
  %v189 = vunpack.c.l.b16 %v50
  %v190 = vunpack.c.l.b16 %v51
  %v191 = vunpack.c.l.b16 %v52
  %v192 = vunpack.c.l.b16 %v53
  %v193 = vunpack.c.l.b16 %v54
  %v194 = vunpack.c.l.b16 %v55
  %v195 = vunpack.c.l.b16 %v56
  %v196 = vunpack.c.l.b16 %v57
  %v197 = vunpack.c.l.b16 %v58
  %v198 = vunpack.c.l.b16 %v59
  %v199 = vunpack.c.l.b16 %v60
  %v200 = vunpack.c.l.b16 %v61
  %v201 = vunpack.c.l.b16 %v62
  %v202 = vunpack.c.l.b16 %v63
  %v203 = vunpack.c.l.b16 %v64
  %v204 = vunpack.c.l.b16 %v65
  %v205 = vunpack.c.l.b16 %v66
  %v206 = vunpack.c.l.b16 %v67
  %v207 = vunpack.c.l.b16 %v68
  %v208 = vunpack.c.l.b16 %v69
  %v209 = vunpack.c.l.b16 %v70
  %v210 = vunpack.c.l.b16 %v71
  %v211 = vunpack.c.l.b16 %v72
  %v212 = vunpack.c.l.b16 %v73
  %v213 = vunpack.c.l.b16 %v74
  %v214 = vunpack.c.l.b16 %v75
  %v215 = vunpack.c.l.b16 %v76
  %v216 = vunpack.c.l.b16 %v77
  %v217 = vunpack.c.l.b16 %v78
  %v218 = vpack.c.b16 %v159, %v158
  %v219 = vpack.c.b16 %v161, %v160
  %v220 = vpack.c.b16 %v163, %v162
  %v221 = vpack.c.b16 %v165, %v164
  %v222 = vpack.c.b16 %v167, %v166
  %v223 = vpack.c.b16 %v169, %v168
  %v224 = vpack.c.b16 %v171, %v170
  %v225 = vpack.c.b16 %v173, %v172
  %v226 = vpack.c.b16 %v175, %v174
  %v227 = vpack.c.b16 %v177, %v176
  %v228 = vpack.c.b16 %v179, %v178
  %v229 = vpack.c.b16 %v181, %v180
  %v230 = vpack.c.b16 %v183, %v182
  %v231 = vpack.c.b16 %v185, %v184
  %v232 = vpack.c.b16 %v187, %v186
  %v233 = vpack.c.b16 %v189, %v188
  %v234 = vpack.c.b16 %v191, %v190
  %v235 = vpack.c.b16 %v193, %v192
  %v236 = vpack.c.b16 %v195, %v194
  %v237 = vpack.c.b16 %v197, %v196
  %v238 = vpack.c.b16 %v199, %v198
  %v239 = vpack.c.b16 %v201, %v200
  %v240 = vpack.c.b16 %v203, %v202
  %v241 = vpack.c.b16 %v205, %v204
  %v242 = vpack.c.b16 %v207, %v206
  %v243 = vpack.c.b16 %v209, %v208
  %v244 = vpack.c.b16 %v211, %v210
  %v245 = vpack.c.b16 %v213, %v212
  %v246 = vpack.c.b16 %v215, %v214
  %v247 = vpack.c.b16 %v217, %v216
  %vm278 = vcmask 785408
  %v280 = vsel %vm278, %v94, 0
  %282 = vmatprep.subr.bf16.mxu0 0
  %283 = vmatpush1.bf16.msra.mxu0 %v225
  %284 = vmatprep.subr.bf16.mxu0 0
  %285 = vmatpush1.bf16.msra.mxu0 %v224
  %286 = vmatprep.subr.bf16.mxu0 0
  %287 = vmatpush1.bf16.msra.mxu0 %v223
  %288 = vmatprep.subr.bf16.mxu0 0
  %289 = vmatpush1.bf16.msra.mxu0 %v222
  %290 = vmatprep.subr.bf16.mxu0 0
  %291 = vmatpush1.bf16.msra.mxu0 %v221
  %292 = vmatprep.subr.bf16.mxu0 0
  %293 = vmatpush1.bf16.msra.mxu0 %v220
  %294 = vmatprep.subr.bf16.mxu0 0
  %295 = vmatpush1.bf16.msra.mxu0 %v219
  %296 = vmatprep.subr.bf16.mxu0 0
  %297 = vmatpush1.bf16.msra.mxu0 %v218
  %298 = vmatprep.subr.bf16.mxu0 0
  %299 = vmatpush2.bf16.msra.mxu0 %v233
  %300 = vmatprep.subr.bf16.mxu0 0
  %301 = vmatpush2.bf16.msra.mxu0 %v232
  %302 = vmatprep.subr.bf16.mxu0 0
  %303 = vmatpush2.bf16.msra.mxu0 %v231
  %304 = vmatprep.subr.bf16.mxu0 0
  %305 = vmatpush2.bf16.msra.mxu0 %v230
  %306 = vmatprep.subr.bf16.mxu0 0
  %307 = vmatpush2.bf16.msra.mxu0 %v229
  %308 = vmatprep.subr.bf16.mxu0 0
  %309 = vmatpush2.bf16.msra.mxu0 %v228
  %310 = vmatprep.subr.bf16.mxu0 0
  %311 = vmatpush2.bf16.msra.mxu0 %v227
  %312 = vmatprep.subr.bf16.mxu0 0
  %313 = vmatpush2.bf16.msra.mxu0 %v226
  %314 = vmatprep.mubr.bf16.mxu0 %v92
  %315 = vmatmul.mubr.bf16.gmra.mxu0 %v91
  %v316 = vpop.f32.mrf.mxu0
  %v317 = vadd.f32 0.0, %v316
  %v318 = vpop.f32.mrf.mxu0
  %v319 = vpop.f32.mrf.mxu0
  %v320 = vadd.f32 0.0, %v319
  %v321 = vpop.f32.mrf.mxu0
  %322 = vdwg.mxu0
  %323 = vmatprep.subr.bf16.mxu0 0
  %324 = vmatpush1.bf16.msra.mxu0 %v241
  %325 = vmatprep.subr.bf16.mxu0 0
  %326 = vmatpush1.bf16.msra.mxu0 %v240
  %327 = vmatprep.subr.bf16.mxu0 0
  %328 = vmatpush1.bf16.msra.mxu0 %v239
  %329 = vmatprep.subr.bf16.mxu0 0
  %330 = vmatpush1.bf16.msra.mxu0 %v238
  %331 = vmatprep.subr.bf16.mxu0 0
  %332 = vmatpush1.bf16.msra.mxu0 %v237
  %333 = vmatprep.subr.bf16.mxu0 0
  %334 = vmatpush1.bf16.msra.mxu0 %v236
  %335 = vmatprep.subr.bf16.mxu0 0
  %336 = vmatpush1.bf16.msra.mxu0 %v235
  %337 = vmatprep.subr.bf16.mxu0 0
  %338 = vmatpush1.bf16.msra.mxu0 %v234
  %339 = vmatprep.subr.bf16.mxu0 0
  %340 = vmatpush2.bf16.msra.mxu0 0
  %341 = vmatprep.subr.bf16.mxu0 0
  %342 = vmatpush2.bf16.msra.mxu0 0
  %343 = vmatprep.subr.bf16.mxu0 0
  %344 = vmatpush2.bf16.msra.mxu0 %v247
  %345 = vmatprep.subr.bf16.mxu0 0
  %346 = vmatpush2.bf16.msra.mxu0 %v246
  %347 = vmatprep.subr.bf16.mxu0 0
  %348 = vmatpush2.bf16.msra.mxu0 %v245
  %349 = vmatprep.subr.bf16.mxu0 0
  %350 = vmatpush2.bf16.msra.mxu0 %v244
  %351 = vmatprep.subr.bf16.mxu0 0
  %352 = vmatpush2.bf16.msra.mxu0 %v243
  %353 = vmatprep.subr.bf16.mxu0 0
  %354 = vmatpush2.bf16.msra.mxu0 %v242
  %355 = vmatprep.mubr.bf16.mxu0 %v280
  %356 = vmatmul.mubr.bf16.gmra.mxu0 %v93
  %v357 = vpop.f32.mrf.mxu0
  %v358 = vadd.f32 %v317, %v357
  %v359 = vpop.f32.mrf.mxu0
  %v360 = vpop.f32.mrf.mxu0
  %v361 = vadd.f32 %v320, %v360
  %v362 = vpop.f32.mrf.mxu0
  %363 = vdwg.mxu0
  %364 = vst [vmem:[%s2] sm:$0xff] %v358
  %365 = vst [vmem:[%s2 + $0x8] sm:$0xff] %v361
  %v366 = vadd.f32 %v358, %v361
  %v367 = vrot.slane %v366, 4
  %v368 = vadd.f32 %v366, %v367
  %v369 = vrot.slane %v368, 2
  %v370 = vadd.f32 %v368, %v369
  %v371 = vrot.slane %v370, 1
  %v372 = vadd.f32 %v370, %v371
  %373 = vst [vmem:[%s3] sm:$0x1] %v372
  %v374 = vmul.f32 %v358, %v358
  %v375 = vmul.f32 %v361, %v361
  %v376 = vadd.f32 %v374, %v375
  %v377 = vrot.slane %v376, 4
  %v378 = vadd.f32 %v376, %v377
  %v379 = vrot.slane %v378, 2
  %v380 = vadd.f32 %v378, %v379
  %v381 = vrot.slane %v380, 1
  %v382 = vadd.f32 %v380, %v381
  %383 = vst [vmem:[%s4] sm:$0x1] %v382
  // Predicated region
  $region10: #{patch_embed_stage1.10} parent=0 // pred_check
    _
  $region11: #{patch_embed_stage1.10} parent=0 // pred_check_branch
    %385 = sbr.rel (0) target = $region13
  $region12: #{patch_embed_stage1.10} parent=0 // pred_region
    _
  $region13: #{patch_embed_stage1.10} parent=0 // pred_fallthru
    _
  // Predicated region
  $region14: #{patch_embed_stage1.10} parent=0 // pred_check
    _
  $region15: #{patch_embed_stage1.10} parent=0 // pred_check_branch
    %387 = sbr.rel (0) target = $region17
  $region16: #{patch_embed_stage1.10} parent=0 // pred_region
    _
  $region17: #{patch_embed_stage1.10} parent=0 // pred_fallthru
    _
  // Predicated region
  $region18: #{patch_embed_stage1.10} parent=0 // pred_check
    _
  $region19: #{patch_embed_stage1.10} parent=0 // pred_check_branch
    %389 = sbr.rel (0) target = $region21
  $region20: #{patch_embed_stage1.10} parent=0 // pred_region
    _
  $region21: #{patch_embed_stage1.10} parent=0 // pred_fallthru
    _
  // Predicated region
  $region22: #{patch_embed_stage1.10} parent=0 // pred_check
    _
  $region23: #{patch_embed_stage1.10} parent=0 // pred_check_branch
    %391 = sbr.rel (0) target = $region25
  $region24: #{patch_embed_stage1.10} parent=0 // pred_region
    _
  $region25: #{patch_embed_stage1.10} parent=0 // pred_fallthru
    _
  // Predicated region
  $region26: #{patch_embed_stage1.10} parent=0 // pred_check
    _
  $region27: #{patch_embed_stage1.10} parent=0 // pred_check_branch
    %393 = sbr.rel (0) target = $region29
  $region28: #{patch_embed_stage1.10} parent=0 // pred_region
    _
  $region29: #{patch_embed_stage1.10} parent=0 // pred_fallthru
    _
  // Predicated region
  $region30: #{patch_embed_stage1.10} parent=0 // pred_check
    _
  $region31: #{patch_embed_stage1.10} parent=0 // pred_check_branch
    %395 = sbr.rel (0) target = $region33
  $region32: #{patch_embed_stage1.10} parent=0 // pred_region
    _
  $region33: #{patch_embed_stage1.10} parent=0 // pred_fallthru
    _

// kernel: patch_embed_stage1.11
$region0: #{patch_embed_stage1.11}
  #allocation0 [shape = 'u32[]', space=smem, size = 0x4, offset = 0x4, fixed_abs, tag = 'smem constant byte address 0x4 - core index']
  #allocation1 [shape = 'u32[144,128]{1,0:T(1,128)}', space=vmem, size = 0x12000, scoped, tag = 'internal scratch']
  %s0 = inlined_call_operand.vmem [shape: f32[16,128], index: 0, kind: input, shape index: {}]
  %s1 = inlined_call_operand.vmem [shape: f32[1,128], index: 1, kind: input, shape index: {}]
  %s2 = inlined_call_operand.vmem [shape: f32[1,128], index: 2, kind: input, shape index: {}]
  %s3 = inlined_call_operand.vmem [shape: bf16[16,128], index: 3, kind: output, shape index: {}]
  %s4 = sld [smem:[#allocation0]]
  $region22: #{patch_embed_stage1.11} parent=0
    _
  %s6 = ssub.s32 1, %s4
  %s7 = scalar_select 0, %s6, %s4
  // Predicated region
  $region2: #{patch_embed_stage1.11} parent=0 // pred_check
    _
  $region3: #{patch_embed_stage1.11} parent=0 // pred_check_branch
    %9 = sbr.rel (0) target = $region5
  $region4: #{patch_embed_stage1.11} parent=0 // pred_region
    _
  $region5: #{patch_embed_stage1.11} parent=0 // pred_fallthru
    _
  // Predicated region
  $region6: #{patch_embed_stage1.11} parent=0 // pred_check
    _
  $region7: #{patch_embed_stage1.11} parent=0 // pred_check_branch
    %11 = sbr.rel (0) target = $region9
  $region8: #{patch_embed_stage1.11} parent=0 // pred_region
    _
  $region9: #{patch_embed_stage1.11} parent=0 // pred_fallthru
    _
  // Predicated region
  $region10: #{patch_embed_stage1.11} parent=0 // pred_check
    _
  $region11: #{patch_embed_stage1.11} parent=0 // pred_check_branch
    %13 = sbr.rel (0) target = $region13
  $region12: #{patch_embed_stage1.11} parent=0 // pred_region
    _
  $region13: #{patch_embed_stage1.11} parent=0 // pred_fallthru
    _
  %v14 = vld [vmem:[%s0] sm:$0xff]
  %v15 = vld [vmem:[%s0 + $0x8] sm:$0xff]
  %v16 = vld [vmem:[%s1] sm:$0x1]
  %v18 = vlaneseq
  %v19 = vshrl.u32 %v18, 7
  %v20 = vsub.s32 0, %v19
  %v21 = vrot.slane %v16, %v20
  %v23 = vmul.f32 %v14, %v21
  %v24 = vmul.f32 %v15, %v21
  %v25 = vld [vmem:[%s2] sm:$0x1]
  %v27 = vlaneseq
  %v28 = vshrl.u32 %v27, 7
  %v29 = vsub.s32 0, %v28
  %v30 = vrot.slane %v25, %v29
  %v32 = vadd.f32 %v23, %v30
  %v33 = vadd.f32 %v24, %v30
  %v34 = vmax.f32 %v32, 0.0
  %v35 = vmax.f32 %v33, 0.0
  %v36 = vpack.c.bf16 %v35, %v34
  %v38 = vunpack.c.l.b16 %v36
  %v39 = vunpack.c.h.b16 %v36
  %v40 = vpack.c.b16 %v38, %v38
  %v41 = vpack.c.b16 %v39, %v39
  %44 = vst [vmem:[%s3] sm:$0xf] %v40
  %45 = vst [vmem:[%s3 + $0x4] sm:$0xf] %v41
  // Predicated region
  $region14: #{patch_embed_stage1.11} parent=0 // pred_check
    _
  $region15: #{patch_embed_stage1.11} parent=0 // pred_check_branch
    %47 = sbr.rel (0) target = $region17
  $region16: #{patch_embed_stage1.11} parent=0 // pred_region
    _
  $region17: #{patch_embed_stage1.11} parent=0 // pred_fallthru
    _
  // Predicated region
  $region18: #{patch_embed_stage1.11} parent=0 // pred_check
    _
  $region19: #{patch_embed_stage1.11} parent=0 // pred_check_branch
    %49 = sbr.rel (0) target = $region21
  $region20: #{patch_embed_stage1.11} parent=0 // pred_region
    _
  $region21: #{patch_embed_stage1.11} parent=0 // pred_fallthru
    _

</llo_original>
